<compile_context>
chip_gen: v7x
topology: tpu7x:2x2x1
jax: 0.10.0
libtpu: 0.0.40
codegen_flags: <defaults>
</compile_context>

<pallas_src>
import jax
import jax.numpy as jnp
from jax.experimental import pallas as pl
from jax.experimental.pallas import tpu as pltpu


def _round_up(x, m):
    return ((x + m - 1) // m) * m


def conv_forward(x, weight, bias, padding, *, t_blk=None, c_blk=None,
                 mxu_dtype=None):
    """x: (B, T, C_in); weight: (C_out, C_in, K) (PyTorch layout); bias: (C_out,)."""
    B, T, C_in = x.shape
    C_out, C_in_w, K = weight.shape
    assert C_in_w == C_in
    pad = int(padding)
    T_out = T + 2 * pad - K + 1
    assert T_out >= 1, "kernel larger than padded input"

    # ---- tile sizes --------------------------------------------------------
    halo = _round_up(max(pad, K - 1 - pad, 1), 8)        # small halo block (rows)
    if t_blk is None:
        t_blk = min(512, T_out)
    t_blk = _round_up(max(int(t_blk), halo), halo)       # multiple of halo (and 8)
    if c_blk is None:
        c_blk = C_out if C_out <= 256 else 256
    c_blk = int(c_blk)
    if c_blk < C_out:
        assert c_blk % 128 == 0, "C_out tile must be lane aligned"

    def vmem_est(tb):
        a_rows = tb + 2 * halo
        dbl = 2 * (tb * C_in + 2 * halo * C_in + K * C_in * c_blk + c_blk
                   + tb * c_blk)                          # double-buffered blocks
        tmp = a_rows * C_in + tb * K * C_in + tb * c_blk  # window / lhs / acc temps
        return 4 * (dbl + tmp)

    # keep the per-step working set comfortably under the scoped-VMEM default
    while vmem_est(t_blk) > 24 * 1024 * 1024 and t_blk > 2 * halo:
        t_blk = _round_up(t_blk // 2, halo)

    n_t = pl.cdiv(T_out, t_blk)
    n_c = pl.cdiv(C_out, c_blk)
    r = t_blk // halo
    n_tb_in = max(pl.cdiv(T, t_blk), 1)   # T_BLK-sized blocks of the input time axis
    n_hb_in = max(pl.cdiv(T, halo), 1)    # HALO-sized blocks of the input time axis
    a_rows = t_blk + 2 * halo             # assembled window rows

    # fold K into the contraction only when C_in is lane aligned
    use_im2col = (C_in % 128 == 0)

    # ---- parameters in kernel-friendly layout (tiny, one-time) -------------
    w2d = jnp.transpose(weight, (2, 1, 0)).reshape(K * C_in, C_out)  # row = k*C_in+ci
    if mxu_dtype is not None:
        w2d = w2d.astype(mxu_dtype)
    b2d = bias.reshape(1, C_out)

    dot_prec = (jax.lax.Precision.HIGHEST if mxu_dtype is None
                else jax.lax.Precision.DEFAULT)

    def kernel(xp_ref, xc_ref, xn_ref, w_ref, b_ref, o_ref):
        t = pl.program_id(2)
        # assembled window: local row j <-> absolute input position t*t_blk - halo + j
        win = jnp.concatenate([xp_ref[0], xc_ref[0], xn_ref[0]], axis=0)
        pos = (t * t_blk - halo
               + jax.lax.broadcasted_iota(jnp.int32, (a_rows, 1), 0))
        win = jnp.where((pos >= 0) & (pos < T), win, jnp.zeros_like(win))

        def tap(k):
            off = halo - pad + k                       # static python int
            if off == 0:
                s = win[:t_blk]
            elif off % 8 == 0:
                s = win[off:off + t_blk]               # sublane-aligned slice
            else:
                # XLU rotation + aligned prefix slice (no per-tap relayout copy)
                s = pltpu.roll(win, (a_rows - off) % a_rows, axis=0)[:t_blk]
            return s if mxu_dtype is None else s.astype(mxu_dtype)

        if use_im2col:
            lhs = jnp.concatenate([tap(k) for k in range(K)], axis=1)
            acc = jnp.dot(lhs, w_ref[...],
                          preferred_element_type=jnp.float32, precision=dot_prec)
        else:
            acc = jnp.dot(tap(0), w_ref[0:C_in, :],
                          preferred_element_type=jnp.float32, precision=dot_prec)
            for k in range(1, K):
                acc += jnp.dot(tap(k), w_ref[k * C_in:(k + 1) * C_in, :],
                               preferred_element_type=jnp.float32,
                               precision=dot_prec)
        acc = acc + b_ref[...].astype(jnp.float32)
        o_ref[0] = acc.astype(o_ref.dtype)

    grid_spec = pltpu.PrefetchScalarGridSpec(
        num_scalar_prefetch=0,
        grid=(B, n_c, n_t),
        in_specs=[
            # previous HALO-block (left halo rows)
            pl.BlockSpec((1, halo, C_in),
                         lambda b, c, t: (b, jnp.clip(t * r - 1, 0, n_hb_in - 1), 0)),
            # current T_BLK block
            pl.BlockSpec((1, t_blk, C_in),
                         lambda b, c, t: (b, jnp.clip(t, 0, n_tb_in - 1), 0)),
            # next HALO-block (right halo rows)
            pl.BlockSpec((1, halo, C_in),
                         lambda b, c, t: (b, jnp.clip((t + 1) * r, 0, n_hb_in - 1), 0)),
            # weight (K*C_in, C_out) tiled along C_out
            pl.BlockSpec((K * C_in, c_blk), lambda b, c, t: (0, c)),
            # bias
            pl.BlockSpec((1, c_blk), lambda b, c, t: (0, c)),
        ],
        out_specs=pl.BlockSpec((1, t_blk, c_blk), lambda b, c, t: (b, t, c)),
    )

    vmem_limit = int(min(60 * 1024 * 1024,
                         max(4 * vmem_est(t_blk), 32 * 1024 * 1024)))

    return pl.pallas_call(
        kernel,
        out_shape=jax.ShapeDtypeStruct((B, T_out, C_out), x.dtype),
        grid_spec=grid_spec,
        compiler_params=pltpu.CompilerParams(
            dimension_semantics=("parallel", "parallel", "parallel"),
            vmem_limit_bytes=vmem_limit),
    )(x, x, x, w2d, b2d)


def conv_reference(x, weight, bias, padding):
    """Pure-JAX reference matching torch.nn.Conv1d applied on (B, C, T)."""
    x_bct = jnp.transpose(x, (0, 2, 1))
    y = jax.lax.conv_general_dilated(
        x_bct, weight, window_strides=(1,), padding=[(padding, padding)],
        dimension_numbers=("NCH", "OIH", "NCH"),
        precision=jax.lax.Precision.HIGHEST)
    y = y + bias.reshape(1, -1, 1)
    return jnp.transpose(y, (0, 2, 1))


if __name__ == "__main__":
    key = jax.random.PRNGKey(0)
    configs = [
        # (B,  T, C_in, C_out, K, pad, t_blk, mxu_dtype,     tol)
        (2, 16, 4,  8, 3, 1, 8,  None,          1e-5),  # halo + in-kernel left/right pad
        (2, 40, 8, 16, 5, 2, 16, None,          1e-5),  # partial last time block
        (1, 16, 4,  8, 3, 0, 8,  None,          1e-5),  # no padding, partial output block
        (2, 16, 4,  8, 3, 1, 8,  jnp.bfloat16,  3e-2),  # bf16 MXU operands (v6e/v7x)
    ]
    for i, (B, T, C_in, C_out, K, pad, tb, mxu, tol) in enumerate(configs):
        key, kx, kw, kb = jax.random.split(key, 4)
        bound = 1.0 / float(C_in * K) ** 0.5
        weight = jax.random.uniform(kw, (C_out, C_in, K), minval=-bound,
                                    maxval=bound, dtype=jnp.float32)
        bias = jax.random.uniform(kb, (C_out,), minval=-bound, maxval=bound,
                                  dtype=jnp.float32)
        x = jax.random.normal(kx, (B, T, C_in), dtype=jnp.float32)

        out = jax.block_until_ready(
            conv_forward(x, weight, bias, pad, t_blk=tb, mxu_dtype=mxu))
        ref = jax.block_until_ready(conv_reference(x, weight, bias, pad))
        assert out.shape == ref.shape, (i, out.shape, ref.shape)
        assert jnp.allclose(out, ref, atol=tol, rtol=tol), (
            f"config {i}: max err {jnp.max(jnp.abs(out - ref))}")

    print("KERNEL_OK")
</pallas_src>

<mosaic_0001>
module attributes {stable_mosaic.version = 11 : i64} {
  func.func @kernel(%arg0: i32, %arg1: i32, %arg2: i32, %arg3: memref<1x8x4xf32, #tpu.memory_space<vmem>>, %arg4: memref<1x8x4xf32, #tpu.memory_space<vmem>>, %arg5: memref<1x8x4xf32, #tpu.memory_space<vmem>>, %arg6: memref<12x8xf32, #tpu.memory_space<vmem>>, %arg7: memref<1x8xf32, #tpu.memory_space<vmem>>, %arg8: memref<1x8x8xf32, #tpu.memory_space<vmem>>) attributes {dimension_semantics = [#tpu.dimension_semantics<parallel>, #tpu.dimension_semantics<parallel>, #tpu.dimension_semantics<parallel>], iteration_bounds = array<i64: 2, 1, 2>, scalar_prefetch = 0 : i64, scratch_operands = 0 : i64, tpu.core_type = #tpu.core_type<tc>, window_params = [{transform_indices = @transform_0, window_bounds = array<i64: 1, 8, 4>}, {transform_indices = @transform_1, window_bounds = array<i64: 1, 8, 4>}, {transform_indices = @transform_2, window_bounds = array<i64: 1, 8, 4>}, {transform_indices = @transform_3, window_bounds = array<i64: 12, 8>}, {transform_indices = @transform_4, window_bounds = array<i64: 1, 8>}, {transform_indices = @transform_5, window_bounds = array<i64: 1, 8, 8>}]} {
    %c0 = arith.constant 0 : index
    %c0_0 = arith.constant 0 : index
    %c0_1 = arith.constant 0 : index
    %0 = vector.load %arg3[%c0, %c0_0, %c0_1] : memref<1x8x4xf32, #tpu.memory_space<vmem>>, vector<1x8x4xf32>
    %1 = vector.shape_cast %0 : vector<1x8x4xf32> to vector<8x4xf32>
    %c0_2 = arith.constant 0 : index
    %c0_3 = arith.constant 0 : index
    %c0_4 = arith.constant 0 : index
    %2 = vector.load %arg4[%c0_2, %c0_3, %c0_4] : memref<1x8x4xf32, #tpu.memory_space<vmem>>, vector<1x8x4xf32>
    %3 = vector.shape_cast %2 : vector<1x8x4xf32> to vector<8x4xf32>
    %c0_5 = arith.constant 0 : index
    %c0_6 = arith.constant 0 : index
    %c0_7 = arith.constant 0 : index
    %4 = vector.load %arg5[%c0_5, %c0_6, %c0_7] : memref<1x8x4xf32, #tpu.memory_space<vmem>>, vector<1x8x4xf32>
    %5 = vector.shape_cast %4 : vector<1x8x4xf32> to vector<8x4xf32>
    %6 = tpu.concatenate %1, %3, %5 in 0 : vector<8x4xf32>, vector<8x4xf32>, vector<8x4xf32> -> vector<24x4xf32>
    %c8_i32 = arith.constant 8 : i32
    %7 = arith.muli %arg2, %c8_i32 : i32
    %c8_i32_8 = arith.constant 8 : i32
    %8 = arith.subi %7, %c8_i32_8 : i32
    %9 = tpu.iota {dimensions = array<i32: 0>} : vector<24x1xi32>
    %10 = vector.broadcast %8 : i32 to vector<24x1xi32>
    %11 = arith.addi %10, %9 : vector<24x1xi32>
    %c0_i32 = arith.constant 0 : i32
    %12 = vector.broadcast %c0_i32 : i32 to vector<24x1xi32>
    %13 = arith.cmpi sge, %11, %12 : vector<24x1xi32>
    %c16_i32 = arith.constant 16 : i32
    %14 = vector.broadcast %c16_i32 : i32 to vector<24x1xi32>
    %15 = arith.cmpi slt, %11, %14 : vector<24x1xi32>
    %16 = arith.andi %13, %15 : vector<24x1xi1>
    %cst = arith.constant 0.000000e+00 : f32
    %17 = vector.broadcast %cst : f32 to vector<24x4xf32>
    %18 = vector.shape_cast %16 : vector<24x1xi1> to vector<24x1xi1>
    %19 = vector.broadcast %18 : vector<24x1xi1> to vector<24x4xi1>
    %20 = arith.select %19, %6, %17 : vector<24x4xi1>, vector<24x4xf32>
    %c17_i32 = arith.constant 17 : i32
    %21 = tpu.dynamic_rotate %20 by %c17_i32 dim 0 : vector<24x4xf32>, i32 -> vector<24x4xf32>
    %22 = vector.extract_strided_slice %21 {offsets = [0, 0], sizes = [8, 4], strides = [1, 1]} : vector<24x4xf32> to vector<8x4xf32>
    %c0_9 = arith.constant 0 : index
    %c0_10 = arith.constant 0 : index
    %23 = vector.load %arg6[%c0_9, %c0_10] : memref<12x8xf32, #tpu.memory_space<vmem>>, vector<4x8xf32>
    %cst_11 = arith.constant dense<0.000000e+00> : vector<8x8xf32>
    %24 = tpu.matmul %22, %23, %cst_11 {dimension_numbers = #tpu.dot_dimension_numbers<[1], [0], [0], [1], [0, 0, 1, 1], [], []>, precision = #tpu.contract_precision<fp32>} : vector<8x4xf32>, vector<4x8xf32>, vector<8x8xf32> -> vector<8x8xf32>
    %25 = vector.extract_strided_slice %20 {offsets = [8, 0], sizes = [8, 4], strides = [1, 1]} : vector<24x4xf32> to vector<8x4xf32>
    %c4 = arith.constant 4 : index
    %c0_12 = arith.constant 0 : index
    %26 = vector.load %arg6[%c4, %c0_12] : memref<12x8xf32, #tpu.memory_space<vmem>>, vector<4x8xf32>
    %cst_13 = arith.constant dense<0.000000e+00> : vector<8x8xf32>
    %27 = tpu.matmul %25, %26, %cst_13 {dimension_numbers = #tpu.dot_dimension_numbers<[1], [0], [0], [1], [0, 0, 1, 1], [], []>, precision = #tpu.contract_precision<fp32>} : vector<8x4xf32>, vector<4x8xf32>, vector<8x8xf32> -> vector<8x8xf32>
    %28 = arith.addf %24, %27 : vector<8x8xf32>
    %c15_i32 = arith.constant 15 : i32
    %29 = tpu.dynamic_rotate %20 by %c15_i32 dim 0 : vector<24x4xf32>, i32 -> vector<24x4xf32>
    %30 = vector.extract_strided_slice %29 {offsets = [0, 0], sizes = [8, 4], strides = [1, 1]} : vector<24x4xf32> to vector<8x4xf32>
    %c8 = arith.constant 8 : index
    %c0_14 = arith.constant 0 : index
    %31 = vector.load %arg6[%c8, %c0_14] : memref<12x8xf32, #tpu.memory_space<vmem>>, vector<4x8xf32>
    %cst_15 = arith.constant dense<0.000000e+00> : vector<8x8xf32>
    %32 = tpu.matmul %30, %31, %cst_15 {dimension_numbers = #tpu.dot_dimension_numbers<[1], [0], [0], [1], [0, 0, 1, 1], [], []>, precision = #tpu.contract_precision<fp32>} : vector<8x4xf32>, vector<4x8xf32>, vector<8x8xf32> -> vector<8x8xf32>
    %33 = arith.addf %28, %32 : vector<8x8xf32>
    %c0_16 = arith.constant 0 : index
    %c0_17 = arith.constant 0 : index
    %34 = vector.load %arg7[%c0_16, %c0_17] : memref<1x8xf32, #tpu.memory_space<vmem>>, vector<1x8xf32>
    %35 = vector.broadcast %34 : vector<1x8xf32> to vector<8x8xf32>
    %36 = arith.addf %33, %35 : vector<8x8xf32>
    %c0_18 = arith.constant 0 : index
    %c0_19 = arith.constant 0 : index
    %c0_20 = arith.constant 0 : index
    %37 = vector.load %arg8[%c0_18, %c0_19, %c0_20] : memref<1x8x8xf32, #tpu.memory_space<vmem>>, vector<1x8x8xf32>
    %38 = vector.shape_cast %37 : vector<1x8x8xf32> to vector<8x8xf32>
    %39 = vector.shape_cast %36 : vector<8x8xf32> to vector<1x8x8xf32>
    tpu.vector_store %arg8[%c0_18, %c0_19, %c0_20], %39 {strides = array<i32>} : memref<1x8x8xf32, #tpu.memory_space<vmem>>, vector<1x8x8xf32>,
    return
  }
  func.func @transform_0(%arg0: i32, %arg1: i32, %arg2: i32) -> (i32, i32, i32) {
    %c1_i32 = arith.constant 1 : i32
    %0 = arith.muli %arg2, %c1_i32 : i32
    %c1_i32_0 = arith.constant 1 : i32
    %1 = arith.subi %0, %c1_i32_0 : i32
    %c0_i32 = arith.constant 0 : i32
    %c1_i32_1 = arith.constant 1 : i32
    %2 = arith.maxsi %c0_i32, %1 : i32
    %3 = arith.minsi %c1_i32_1, %2 : i32
    %c0_i32_2 = arith.constant 0 : i32
    %c0_i32_3 = arith.constant 0 : i32
    return %arg0, %3, %c0_i32_2 : i32, i32, i32
  }
  func.func @transform_1(%arg0: i32, %arg1: i32, %arg2: i32) -> (i32, i32, i32) {
    %c0_i32 = arith.constant 0 : i32
    %c1_i32 = arith.constant 1 : i32
    %0 = arith.maxsi %c0_i32, %arg2 : i32
    %1 = arith.minsi %c1_i32, %0 : i32
    %c0_i32_0 = arith.constant 0 : i32
    %c0_i32_1 = arith.constant 0 : i32
    return %arg0, %1, %c0_i32_0 : i32, i32, i32
  }
  func.func @transform_2(%arg0: i32, %arg1: i32, %arg2: i32) -> (i32, i32, i32) {
    %c1_i32 = arith.constant 1 : i32
    %0 = arith.addi %arg2, %c1_i32 : i32
    %c1_i32_0 = arith.constant 1 : i32
    %1 = arith.muli %0, %c1_i32_0 : i32
    %c0_i32 = arith.constant 0 : i32
    %c1_i32_1 = arith.constant 1 : i32
    %2 = arith.maxsi %c0_i32, %1 : i32
    %3 = arith.minsi %c1_i32_1, %2 : i32
    %c0_i32_2 = arith.constant 0 : i32
    %c0_i32_3 = arith.constant 0 : i32
    return %arg0, %3, %c0_i32_2 : i32, i32, i32
  }
  func.func @transform_3(%arg0: i32, %arg1: i32, %arg2: i32) -> (i32, i32) {
    %c0_i32 = arith.constant 0 : i32
    %c0_i32_0 = arith.constant 0 : i32
    return %c0_i32, %arg1 : i32, i32
  }
  func.func @transform_4(%arg0: i32, %arg1: i32, %arg2: i32) -> (i32, i32) {
    %c0_i32 = arith.constant 0 : i32
    %c0_i32_0 = arith.constant 0 : i32
    return %c0_i32, %arg1 : i32, i32
  }
  func.func @transform_5(%arg0: i32, %arg1: i32, %arg2: i32) -> (i32, i32, i32) {
    %c0_i32 = arith.constant 0 : i32
    return %arg0, %arg2, %arg1 : i32, i32, i32
  }
}

</mosaic_0001>

<llo_original>
// kernel: tpu_custom_call.1
$region0: #{tpu_custom_call.1}
  #allocation0 [shape = 'u32[]', space=smem, size = 0x4, offset = 0x4, fixed_abs, tag = 'smem constant byte address 0x4 - core index']
  #allocation1 [shape = 'u32[144,128]{1,0:T(1,128)}', space=vmem, size = 0x12000, scoped, tag = 'internal scratch']
  %s0 = inlined_call_operand.vmem [shape: f32[2,16,4], index: 0, kind: input, shape index: {}]
  %s1 = inlined_call_operand.vmem [shape: f32[2,16,4], index: 1, kind: input, shape index: {}]
  %s2 = inlined_call_operand.vmem [shape: f32[2,16,4], index: 2, kind: input, shape index: {}]
  %s3 = inlined_call_operand.vmem [shape: f32[12,8], index: 3, kind: input, shape index: {}]
  %s4 = inlined_call_operand.vmem [shape: f32[1,8], index: 4, kind: input, shape index: {}]
  %s5 = inlined_call_operand.vmem [shape: f32[2,16,8], index: 5, kind: output, shape index: {}]
  %s6 = sld [smem:[#allocation0]]
  $region53: #{tpu_custom_call.1} parent=0
    _
  %s8 = ssub.s32 1, %s6
  %s9 = scalar_select 0, %s8, %s6
  loop: start=0, step=1, limit=6
  $region2: #{tpu_custom_call.1} parent=0 // loop_pre_header
    _
  $region3: #{tpu_custom_call.1} parent=0 // loop_header
    %s11 = sphi 0, %s15
    %p12 = scmp.ge.s32.totalorder %s11, 6
    %s18 = sphi 0, %s37
    %s19 = sphi 0, %s33
    %s20 = sphi 0, %s29
    %s21 = sphi 0, %s18
    %s22 = sphi 0, %s19
    %s23 = sphi 0, %s20
    %s24 = sphi 0, %s21
    %s25 = sphi 0, %s22
    %s26 = sphi 0, %s23
    %s52 = sphi 0, %s54
    %s55 = sphi 0, %s52
    %s56 = sphi 0, %s55
    %s72 = sphi 0, %s56
    %s88 = sphi 0, %s90
    %s91 = sphi 0, %s88
    %s92 = sphi 0, %s91
    %s108 = sphi 0, %s92
    %s126 = sphi 0, %s128
    %s129 = sphi 0, %s126
    %s130 = sphi 0, %s129
    %s146 = sphi 0, %s130
    %s152 = sphi 0, %s154
    %s155 = sphi 0, %s152
    %s156 = sphi 0, %s155
    %s172 = sphi 0, %s156
    %s178 = sphi 0, %s180
    %s181 = sphi 0, %s178
    %s182 = sphi 0, %s181
    %s198 = sphi 0, %s182
    %s208 = sphi 0, %s210
    %s211 = sphi 0, %s208
    %s212 = sphi 0, %s211
    %s228 = sphi 0, %s212
  $region4: #{tpu_custom_call.1} parent=0 // loop_header_branch
    %14 = sbr.rel (%p12) target = $region8
  $region5: #{tpu_custom_call.1} parent=0 // loop_body
    %s16 = ssub.s32 %s11, 1
    %s17 = ssub.s32 %s11, 2
    %s27 = sadd.s32 1, %s20
    %p28 = scmp.ge.s32.totalorder %s27, 2
    %s29 = scalar_select %p28, 0, %s27
    %s30 = sadd.s32 1, %s19
    %s31 = scalar_select %p28, %s30, %s19
    %p32 = scmp.ge.s32.totalorder %s31, 1
    %s33 = scalar_select %p32, 0, %s31
    %s34 = sadd.s32 1, %s18
    %s35 = scalar_select %p32, %s34, %s18
    %p36 = scmp.ge.s32.totalorder %s35, 2
    %s37 = scalar_select %p36, 0, %s35
    %s38 = ssub.s32 %s20, 1
    %p39 = scmp.gt.s32.totalorder %s38, 0
    %s40 = scalar_select %p39, %s38, 0
    %p41 = scmp.lt.s32.totalorder %s40, 1
    %s42 = scalar_select %p41, %s40, 1
    %s43 = ssub.s32 %s29, 1
    %p44 = scmp.gt.s32.totalorder %s43, 0
    %s45 = scalar_select %p44, %s43, 0
    %p46 = scmp.lt.s32.totalorder %s45, 1
    %s47 = scalar_select %p46, %s45, 1
    %s48 = ssub.s32 %s18, %s37
    %s49 = ssub.s32 %s42, %s47
    %s50 = sor.u32 %s48, %s49
    %p51 = scmp.eq.s32.totalorder %s50, 0
    %s53 = sadd.s32 %s52, 1
    %s54 = scalar_select %p51, %s52, %s53
    %p57 = pneg %p51
    %p58 = scmp.eq.s32.totalorder %s11, 3
    %p59 = por %p57, %p58
    %p60 = scmp.ne.s32.totalorder %s52, %s55
    %p61 = scmp.eq.s32.totalorder %s11, 0
    %p62 = por %p60, %p61
    %p63 = scmp.ne.s32.totalorder %s52, %s55
    %p64 = scmp.eq.s32.totalorder %s16, 3
    %p65 = por %p63, %p64
    %p66 = scmp.ne.s32.totalorder %s55, %s56
    %p67 = scmp.eq.s32.totalorder %s16, 0
    %p68 = por %p66, %p67
    %p69 = scmp.ne.s32.totalorder %s55, %s56
    %p70 = scmp.eq.s32.totalorder %s17, 3
    %p71 = por %p69, %p70
    %p73 = scmp.ne.s32.totalorder %s56, %s72
    %p74 = scmp.eq.s32.totalorder %s17, 0
    %p75 = por %p73, %p74
    %p76 = scmp.gt.s32.totalorder %s20, 0
    %s77 = scalar_select %p76, %s20, 0
    %p78 = scmp.lt.s32.totalorder %s77, 1
    %s79 = scalar_select %p78, %s77, 1
    %p80 = scmp.gt.s32.totalorder %s29, 0
    %s81 = scalar_select %p80, %s29, 0
    %p82 = scmp.lt.s32.totalorder %s81, 1
    %s83 = scalar_select %p82, %s81, 1
    %s84 = ssub.s32 %s18, %s37
    %s85 = ssub.s32 %s79, %s83
    %s86 = sor.u32 %s84, %s85
    %p87 = scmp.eq.s32.totalorder %s86, 0
    %s89 = sadd.s32 %s88, 1
    %s90 = scalar_select %p87, %s88, %s89
    %p93 = pneg %p87
    %p94 = scmp.eq.s32.totalorder %s11, 3
    %p95 = por %p93, %p94
    %p96 = scmp.ne.s32.totalorder %s88, %s91
    %p97 = scmp.eq.s32.totalorder %s11, 0
    %p98 = por %p96, %p97
    %p99 = scmp.ne.s32.totalorder %s88, %s91
    %p100 = scmp.eq.s32.totalorder %s16, 3
    %p101 = por %p99, %p100
    %p102 = scmp.ne.s32.totalorder %s91, %s92
    %p103 = scmp.eq.s32.totalorder %s16, 0
    %p104 = por %p102, %p103
    %p105 = scmp.ne.s32.totalorder %s91, %s92
    %p106 = scmp.eq.s32.totalorder %s17, 3
    %p107 = por %p105, %p106
    %p109 = scmp.ne.s32.totalorder %s92, %s108
    %p110 = scmp.eq.s32.totalorder %s17, 0
    %p111 = por %p109, %p110
    %s112 = sadd.s32 %s20, 1
    %p113 = scmp.gt.s32.totalorder %s112, 0
    %s114 = scalar_select %p113, %s112, 0
    %p115 = scmp.lt.s32.totalorder %s114, 1
    %s116 = scalar_select %p115, %s114, 1
    %s117 = sadd.s32 %s29, 1
    %p118 = scmp.gt.s32.totalorder %s117, 0
    %s119 = scalar_select %p118, %s117, 0
    %p120 = scmp.lt.s32.totalorder %s119, 1
    %s121 = scalar_select %p120, %s119, 1
    %s122 = ssub.s32 %s18, %s37
    %s123 = ssub.s32 %s116, %s121
    %s124 = sor.u32 %s122, %s123
    %p125 = scmp.eq.s32.totalorder %s124, 0
    %s127 = sadd.s32 %s126, 1
    %s128 = scalar_select %p125, %s126, %s127
    %p131 = pneg %p125
    %p132 = scmp.eq.s32.totalorder %s11, 3
    %p133 = por %p131, %p132
    %p134 = scmp.ne.s32.totalorder %s126, %s129
    %p135 = scmp.eq.s32.totalorder %s11, 0
    %p136 = por %p134, %p135
    %p137 = scmp.ne.s32.totalorder %s126, %s129
    %p138 = scmp.eq.s32.totalorder %s16, 3
    %p139 = por %p137, %p138
    %p140 = scmp.ne.s32.totalorder %s129, %s130
    %p141 = scmp.eq.s32.totalorder %s16, 0
    %p142 = por %p140, %p141
    %p143 = scmp.ne.s32.totalorder %s129, %s130
    %p144 = scmp.eq.s32.totalorder %s17, 3
    %p145 = por %p143, %p144
    %p147 = scmp.ne.s32.totalorder %s130, %s146
    %p148 = scmp.eq.s32.totalorder %s17, 0
    %p149 = por %p147, %p148
    %s150 = ssub.s32 %s19, %s33
    %p151 = scmp.eq.s32.totalorder %s150, 0
    %s153 = sadd.s32 %s152, 1
    %s154 = scalar_select %p151, %s152, %s153
    %p157 = pneg %p151
    %p158 = scmp.eq.s32.totalorder %s11, 3
    %p159 = por %p157, %p158
    %p160 = scmp.ne.s32.totalorder %s152, %s155
    %p161 = scmp.eq.s32.totalorder %s11, 0
    %p162 = por %p160, %p161
    %p163 = scmp.ne.s32.totalorder %s152, %s155
    %p164 = scmp.eq.s32.totalorder %s16, 3
    %p165 = por %p163, %p164
    %p166 = scmp.ne.s32.totalorder %s155, %s156
    %p167 = scmp.eq.s32.totalorder %s16, 0
    %p168 = por %p166, %p167
    %p169 = scmp.ne.s32.totalorder %s155, %s156
    %p170 = scmp.eq.s32.totalorder %s17, 3
    %p171 = por %p169, %p170
    %p173 = scmp.ne.s32.totalorder %s156, %s172
    %p174 = scmp.eq.s32.totalorder %s17, 0
    %p175 = por %p173, %p174
    %s176 = ssub.s32 %s19, %s33
    %p177 = scmp.eq.s32.totalorder %s176, 0
    %s179 = sadd.s32 %s178, 1
    %s180 = scalar_select %p177, %s178, %s179
    %p183 = pneg %p177
    %p184 = scmp.eq.s32.totalorder %s11, 3
    %p185 = por %p183, %p184
    %p186 = scmp.ne.s32.totalorder %s178, %s181
    %p187 = scmp.eq.s32.totalorder %s11, 0
    %p188 = por %p186, %p187
    %p189 = scmp.ne.s32.totalorder %s178, %s181
    %p190 = scmp.eq.s32.totalorder %s16, 3
    %p191 = por %p189, %p190
    %p192 = scmp.ne.s32.totalorder %s181, %s182
    %p193 = scmp.eq.s32.totalorder %s16, 0
    %p194 = por %p192, %p193
    %p195 = scmp.ne.s32.totalorder %s181, %s182
    %p196 = scmp.eq.s32.totalorder %s17, 3
    %p197 = por %p195, %p196
    %p199 = scmp.ne.s32.totalorder %s182, %s198
    %p200 = scmp.eq.s32.totalorder %s17, 0
    %p201 = por %p199, %p200
    %s202 = ssub.s32 %s18, %s37
    %s203 = ssub.s32 %s20, %s29
    %s204 = sor.u32 %s202, %s203
    %s205 = ssub.s32 %s19, %s33
    %s206 = sor.u32 %s204, %s205
    %p207 = scmp.eq.s32.totalorder %s206, 0
    %s209 = sadd.s32 %s208, 1
    %s210 = scalar_select %p207, %s208, %s209
    %p213 = pneg %p207
    %p214 = scmp.eq.s32.totalorder %s11, 3
    %p215 = por %p213, %p214
    %p216 = scmp.ne.s32.totalorder %s208, %s211
    %p217 = scmp.eq.s32.totalorder %s11, 0
    %p218 = por %p216, %p217
    %p219 = scmp.ne.s32.totalorder %s208, %s211
    %p220 = scmp.eq.s32.totalorder %s16, 3
    %p221 = por %p219, %p220
    %p222 = scmp.ne.s32.totalorder %s211, %s212
    %p223 = scmp.eq.s32.totalorder %s16, 0
    %p224 = por %p222, %p223
    %p225 = scmp.ne.s32.totalorder %s211, %s212
    %p226 = scmp.eq.s32.totalorder %s17, 3
    %p227 = por %p225, %p226
    %p229 = scmp.ne.s32.totalorder %s212, %s228
    %p230 = scmp.eq.s32.totalorder %s17, 0
    %p231 = por %p229, %p230
    %p232 = scmp.le.s32.totalorder 1, %s11
    %p233 = scmp.lt.s32.totalorder %s11, 5
    %p234 = pnand %p232, %p233
    %p235 = pneg %p234
    // Predicated region
    $region9: #{tpu_custom_call.1} parent=5 // pred_check
      _
    $region10: #{tpu_custom_call.1} parent=5 // pred_check_branch
      %237 = sbr.rel (%p234) target = $region12
    $region11: #{tpu_custom_call.1} parent=5 // pred_region
      %s238 = ssub.s32 %s11, 1
      // Predicated region
      $region13: #{tpu_custom_call.1} parent=11 // pred_check
        %p239 = pneg %p168
      $region14: #{tpu_custom_call.1} parent=11 // pred_check_branch
        %241 = sbr.rel (%p239) target = $region16
      $region15: #{tpu_custom_call.1} parent=11 // pred_region
        %p242 = scmp.lt.s32.totalorder %s22, 0
        %s243 = scalar_select %p242, %s22, 0
        %s244 = smul.addr %s243, 8
        %s245 = scalar_lea.vmem %s3, %s244
      $region16: #{tpu_custom_call.1} parent=11 // pred_fallthru
        _
      // Predicated region
      $region17: #{tpu_custom_call.1} parent=11 // pred_check
        %p246 = pneg %p194
      $region18: #{tpu_custom_call.1} parent=11 // pred_check_branch
        %248 = sbr.rel (%p246) target = $region20
      $region19: #{tpu_custom_call.1} parent=11 // pred_region
        %p249 = scmp.lt.s32.totalorder %s22, 0
        %s250 = scalar_select %p249, %s22, 0
        %s251 = scalar_lea.vmem %s4, %s250
      $region20: #{tpu_custom_call.1} parent=11 // pred_fallthru
        _
    $region12: #{tpu_custom_call.1} parent=5 // pred_fallthru
      _
    %p252 = scmp.lt.s32.totalorder %s11, 4
    // Predicated region
    $region21: #{tpu_custom_call.1} parent=5 // pred_check
      %p253 = pneg %p252
    $region22: #{tpu_custom_call.1} parent=5 // pred_check_branch
      %255 = sbr.rel (%p253) target = $region24
    $region23: #{tpu_custom_call.1} parent=5 // pred_region
      // Predicated region
      $region25: #{tpu_custom_call.1} parent=23 // pred_check
        %p256 = pneg %p62
      $region26: #{tpu_custom_call.1} parent=23 // pred_check_branch
        %258 = sbr.rel (%p256) target = $region28
      $region27: #{tpu_custom_call.1} parent=23 // pred_region
        %s259 = ssub.s32 %s20, 1
        %p260 = scmp.gt.s32.totalorder %s259, 0
        %s261 = scalar_select %p260, %s259, 0
        %p262 = scmp.lt.s32.totalorder %s261, 1
        %s263 = scalar_select %p262, %s261, 1
        %p264 = scmp.lt.s32.totalorder %s18, 1
        %s265 = scalar_select %p264, %s18, 1
        %p266 = scmp.lt.s32.totalorder %s263, 1
        %s267 = scalar_select %p266, %s263, 1
        %s268 = smul.addr %s265, 2
        %s269 = sadd.s32 %s267, %s268
        %s270 = smul.addr %s269, 8
        %s271 = scalar_lea.vmem %s0, %s270
        %s272 = ssub.s32 %s20, 1
        %p273 = scmp.gt.s32.totalorder %s272, 0
        %s274 = scalar_select %p273, %s272, 0
        %p275 = scmp.lt.s32.totalorder %s274, 1
        %s276 = scalar_select %p275, %s274, 1
      $region28: #{tpu_custom_call.1} parent=23 // pred_fallthru
        _
      // Predicated region
      $region29: #{tpu_custom_call.1} parent=23 // pred_check
        %p277 = pneg %p98
      $region30: #{tpu_custom_call.1} parent=23 // pred_check_branch
        %279 = sbr.rel (%p277) target = $region32
      $region31: #{tpu_custom_call.1} parent=23 // pred_region
        %p280 = scmp.gt.s32.totalorder %s20, 0
        %s281 = scalar_select %p280, %s20, 0
        %p282 = scmp.lt.s32.totalorder %s281, 1
        %s283 = scalar_select %p282, %s281, 1
        %p284 = scmp.lt.s32.totalorder %s18, 1
        %s285 = scalar_select %p284, %s18, 1
        %p286 = scmp.lt.s32.totalorder %s283, 1
        %s287 = scalar_select %p286, %s283, 1
        %s288 = smul.addr %s285, 2
        %s289 = sadd.s32 %s287, %s288
        %s290 = smul.addr %s289, 8
        %s291 = scalar_lea.vmem %s1, %s290
        %p292 = scmp.gt.s32.totalorder %s20, 0
        %s293 = scalar_select %p292, %s20, 0
        %p294 = scmp.lt.s32.totalorder %s293, 1
        %s295 = scalar_select %p294, %s293, 1
      $region32: #{tpu_custom_call.1} parent=23 // pred_fallthru
        _
      // Predicated region
      $region33: #{tpu_custom_call.1} parent=23 // pred_check
        %p296 = pneg %p136
      $region34: #{tpu_custom_call.1} parent=23 // pred_check_branch
        %298 = sbr.rel (%p296) target = $region36
      $region35: #{tpu_custom_call.1} parent=23 // pred_region
        %s299 = sadd.s32 %s20, 1
        %p300 = scmp.gt.s32.totalorder %s299, 0
        %s301 = scalar_select %p300, %s299, 0
        %p302 = scmp.lt.s32.totalorder %s301, 1
        %s303 = scalar_select %p302, %s301, 1
        %p304 = scmp.lt.s32.totalorder %s18, 1
        %s305 = scalar_select %p304, %s18, 1
        %p306 = scmp.lt.s32.totalorder %s303, 1
        %s307 = scalar_select %p306, %s303, 1
        %s308 = smul.addr %s305, 2
        %s309 = sadd.s32 %s307, %s308
        %s310 = smul.addr %s309, 8
        %s311 = scalar_lea.vmem %s2, %s310
        %s312 = sadd.s32 %s20, 1
        %p313 = scmp.gt.s32.totalorder %s312, 0
        %s314 = scalar_select %p313, %s312, 0
        %p315 = scmp.lt.s32.totalorder %s314, 1
        %s316 = scalar_select %p315, %s314, 1
      $region36: #{tpu_custom_call.1} parent=23 // pred_fallthru
        _
    $region24: #{tpu_custom_call.1} parent=5 // pred_fallthru
      _
    %p317 = scmp.le.s32.totalorder 1, %s11
    %p318 = scmp.lt.s32.totalorder %s11, 5
    %p319 = pnand %p317, %p318
    %p320 = pneg %p319
    // Predicated region
    $region37: #{tpu_custom_call.1} parent=5 // pred_check
      _
    $region38: #{tpu_custom_call.1} parent=5 // pred_check_branch
      %322 = sbr.rel (%p319) target = $region40
    $region39: #{tpu_custom_call.1} parent=5 // pred_region
      %s323 = ssub.s32 %s11, 1
      %s324 = ssub.s32 %s23, 1
      %p325 = scmp.gt.s32.totalorder %s324, 0
      %s326 = scalar_select %p325, %s324, 0
      %p327 = scmp.lt.s32.totalorder %s326, 1
      %s328 = scalar_select %p327, %s326, 1
      %p329 = scmp.lt.s32.totalorder %s21, 1
      %s330 = scalar_select %p329, %s21, 1
      %p331 = scmp.lt.s32.totalorder %s328, 1
      %s332 = scalar_select %p331, %s328, 1
      %s333 = smul.addr %s330, 2
      %s334 = sadd.s32 %s332, %s333
      %s335 = smul.addr %s334, 8
      %s336 = scalar_lea.vmem %s0, %s335
      %p337 = pneg %p68
      %p338 = pneg %p65
      %p339 = scmp.gt.s32.totalorder %s23, 0
      %s340 = scalar_select %p339, %s23, 0
      %p341 = scmp.lt.s32.totalorder %s340, 1
      %s342 = scalar_select %p341, %s340, 1
      %p343 = scmp.lt.s32.totalorder %s21, 1
      %s344 = scalar_select %p343, %s21, 1
      %p345 = scmp.lt.s32.totalorder %s342, 1
      %s346 = scalar_select %p345, %s342, 1
      %s347 = smul.addr %s344, 2
      %s348 = sadd.s32 %s346, %s347
      %s349 = smul.addr %s348, 8
      %s350 = scalar_lea.vmem %s1, %s349
      %p351 = pneg %p104
      %p352 = pneg %p101
      %s353 = sadd.s32 %s23, 1
      %p354 = scmp.gt.s32.totalorder %s353, 0
      %s355 = scalar_select %p354, %s353, 0
      %p356 = scmp.lt.s32.totalorder %s355, 1
      %s357 = scalar_select %p356, %s355, 1
      %p358 = scmp.lt.s32.totalorder %s21, 1
      %s359 = scalar_select %p358, %s21, 1
      %p360 = scmp.lt.s32.totalorder %s357, 1
      %s361 = scalar_select %p360, %s357, 1
      %s362 = smul.addr %s359, 2
      %s363 = sadd.s32 %s361, %s362
      %s364 = smul.addr %s363, 8
      %s365 = scalar_lea.vmem %s2, %s364
      %p366 = pneg %p142
      %p367 = pneg %p139
      %p368 = scmp.lt.s32.totalorder %s22, 0
      %s369 = scalar_select %p368, %s22, 0
      %s370 = smul.addr %s369, 8
      %s371 = scalar_lea.vmem %s3, %s370
      %p372 = pneg %p168
      %p373 = pneg %p165
      %p374 = scmp.lt.s32.totalorder %s22, 0
      %s375 = scalar_select %p374, %s22, 0
      %s376 = scalar_lea.vmem %s4, %s375
      %p377 = pneg %p194
      %p378 = pneg %p191
      %p379 = pneg %p224
      %p380 = pneg %p221
      %p381 = scmp.lt.s32.totalorder %s21, 1
      %s382 = scalar_select %p381, %s21, 1
      %p383 = scmp.lt.s32.totalorder %s23, 1
      %s384 = scalar_select %p383, %s23, 1
      %p385 = scmp.lt.s32.totalorder %s22, 0
      %s386 = scalar_select %p385, %s22, 0
      %s387 = sadd.s32 %s386, %s384
      %s388 = smul.addr %s382, 2
      %s389 = sadd.s32 %s387, %s388
      %s390 = smul.addr %s389, 8
      %s391 = scalar_lea.vmem %s5, %s390
      %s392 = ssub.s32 %s23, 1
      %p393 = scmp.gt.s32.totalorder %s392, 0
      %s394 = scalar_select %p393, %s392, 0
      %p395 = scmp.lt.s32.totalorder %s394, 1
      %s396 = scalar_select %p395, %s394, 1
      %p397 = scmp.lt.s32.totalorder %s21, 1
      %s398 = scalar_select %p397, %s21, 1
      %p399 = scmp.lt.s32.totalorder %s396, 1
      %s400 = scalar_select %p399, %s396, 1
      %s401 = smul.addr %s398, 2
      %s402 = sadd.s32 %s400, %s401
      %s403 = smul.addr %s402, 8
      %s404 = scalar_lea.vmem %s0, %s403
      %s405 = ssub.s32 %s23, 1
      %p406 = scmp.gt.s32.totalorder %s405, 0
      %s407 = scalar_select %p406, %s405, 0
      %p408 = scmp.lt.s32.totalorder %s407, 1
      %s409 = scalar_select %p408, %s407, 1
      %p410 = scmp.gt.s32.totalorder %s23, 0
      %s411 = scalar_select %p410, %s23, 0
      %p412 = scmp.lt.s32.totalorder %s411, 1
      %s413 = scalar_select %p412, %s411, 1
      %p414 = scmp.lt.s32.totalorder %s21, 1
      %s415 = scalar_select %p414, %s21, 1
      %p416 = scmp.lt.s32.totalorder %s413, 1
      %s417 = scalar_select %p416, %s413, 1
      %s418 = smul.addr %s415, 2
      %s419 = sadd.s32 %s417, %s418
      %s420 = smul.addr %s419, 8
      %s421 = scalar_lea.vmem %s1, %s420
      %p422 = scmp.gt.s32.totalorder %s23, 0
      %s423 = scalar_select %p422, %s23, 0
      %p424 = scmp.lt.s32.totalorder %s423, 1
      %s425 = scalar_select %p424, %s423, 1
      %s426 = sadd.s32 %s23, 1
      %p427 = scmp.gt.s32.totalorder %s426, 0
      %s428 = scalar_select %p427, %s426, 0
      %p429 = scmp.lt.s32.totalorder %s428, 1
      %s430 = scalar_select %p429, %s428, 1
      %p431 = scmp.lt.s32.totalorder %s21, 1
      %s432 = scalar_select %p431, %s21, 1
      %p433 = scmp.lt.s32.totalorder %s430, 1
      %s434 = scalar_select %p433, %s430, 1
      %s435 = smul.addr %s432, 2
      %s436 = sadd.s32 %s434, %s435
      %s437 = smul.addr %s436, 8
      %s438 = scalar_lea.vmem %s2, %s437
      %s439 = sadd.s32 %s23, 1
      %p440 = scmp.gt.s32.totalorder %s439, 0
      %s441 = scalar_select %p440, %s439, 0
      %p442 = scmp.lt.s32.totalorder %s441, 1
      %s443 = scalar_select %p442, %s441, 1
      %p444 = scmp.lt.s32.totalorder %s22, 0
      %s445 = scalar_select %p444, %s22, 0
      %s446 = smul.addr %s445, 8
      %s447 = scalar_lea.vmem %s3, %s446
      %p448 = scmp.lt.s32.totalorder %s22, 0
      %s449 = scalar_select %p448, %s22, 0
      %s450 = scalar_lea.vmem %s4, %s449
      %p451 = scmp.lt.s32.totalorder %s21, 1
      %s452 = scalar_select %p451, %s21, 1
      %p453 = scmp.lt.s32.totalorder %s23, 1
      %s454 = scalar_select %p453, %s23, 1
      %p455 = scmp.lt.s32.totalorder %s22, 0
      %s456 = scalar_select %p455, %s22, 0
      %s457 = sadd.s32 %s456, %s454
      %s458 = smul.addr %s452, 2
      %s459 = sadd.s32 %s457, %s458
      %s460 = smul.addr %s459, 8
      %s461 = scalar_lea.vmem %s5, %s460
      %v462 = vld [vmem:[%s404] sm:$0xff]
      %v463 = vld [vmem:[%s421] sm:$0xff]
      %v464 = vld [vmem:[%s438] sm:$0xff]
      %s465 = smul.u32 %s23, 8
      %s466 = ssub.s32 %s465, 8
      %v467 = vlaneseq
      %v468 = vshrl.u32 %v467, 7
      %v469 = vadd.s32 %v468, 8
      %v470 = vadd.s32 %v468, 16
      %v471 = vstv %s466
      %v472 = vadd.s32 %v471, %v468
      %v473 = vadd.s32 %v471, %v469
      %v474 = vadd.s32 %v471, %v470
      %vm475 = vcmp.ge.s32.totalorder %v472, 0
      %vm476 = vcmp.ge.s32.totalorder %v473, 0
      %vm477 = vcmp.ge.s32.totalorder %v474, 0
      %vm478 = vcmp.lt.s32.totalorder %v472, 16
      %vm479 = vcmp.lt.s32.totalorder %v473, 16
      %vm480 = vcmp.lt.s32.totalorder %v474, 16
      %vm481 = vmand %vm475, %vm478
      %vm482 = vmand %vm476, %vm479
      %vm483 = vmand %vm477, %vm480
      %v484 = vsel %vm481, 1, 0
      %v485 = vsel %vm482, 1, 0
      %v486 = vsel %vm483, 1, 0
      %vm487 = vcmp.eq.s32.totalorder %v484, 1
      %vm488 = vcmp.eq.s32.totalorder %v485, 1
      %vm489 = vcmp.eq.s32.totalorder %v486, 1
      %v490 = vsel %vm487, %v462, 0.0
      %v491 = vsel %vm488, %v463, 0.0
      %v492 = vsel %vm489, %v464, 0.0
      %v493 = vrot.slane %v490, 7
      %v494 = vrot.slane %v491, 7
      %vm495 = vcmp.lt.s32.totalorder %v468, 1
      %v496 = vsel %vm495, %v493, %v494
      %v497 = vld [vmem:[%s447] sm:$0xf]
      %v498 = vld [vmem:[%s447 + $0x4] sm:$0xf]
      %vm499 = vcmask 31744
      %v501 = vsel %vm499, %v491, 0
      %vm503 = vcmask 1043456
      %v505 = vsel %vm503, %v498, 0
      %507 = vmatprep.subr.mxu0 0.0
      %v508 = vand.u32 %v505, 4294901760
      %509 = vmatpush1.msra.mxu0 %v508
      %510 = vmatprep.subr.mxu0 0.0
      %511 = vmatpush1.msra.mxu0 0.0
      %512 = vmatprep.subr.mxu0 0.0
      %513 = vmatpush1.msra.mxu0 0.0
      %514 = vmatprep.subr.mxu0 0.0
      %515 = vmatpush1.msra.mxu0 0.0
      %516 = vmatprep.subr.mxu0 0.0
      %517 = vmatpush1.msra.mxu0 0.0
      %518 = vmatprep.subr.mxu0 0.0
      %519 = vmatpush1.msra.mxu0 0.0
      %520 = vmatprep.subr.mxu0 0.0
      %521 = vmatpush1.msra.mxu0 0.0
      %522 = vmatprep.subr.mxu0 0.0
      %523 = vmatpush1.msra.mxu0 0.0
      %524 = vmatprep.subr.mxu0 0.0
      %525 = vmatpush1.msra.mxu0 0.0
      %526 = vmatprep.subr.mxu0 0.0
      %527 = vmatpush1.msra.mxu0 0.0
      %528 = vmatprep.subr.mxu0 0.0
      %529 = vmatpush1.msra.mxu0 0.0
      %530 = vmatprep.subr.mxu0 0.0
      %531 = vmatpush1.msra.mxu0 0.0
      %532 = vmatprep.subr.mxu0 0.0
      %533 = vmatpush1.msra.mxu0 0.0
      %534 = vmatprep.subr.mxu0 0.0
      %535 = vmatpush1.msra.mxu0 0.0
      %536 = vmatprep.subr.mxu0 0.0
      %537 = vmatpush1.msra.mxu0 0.0
      %538 = vmatprep.subr.mxu0 0.0
      %539 = vmatpush1.msra.mxu0 0.0
      %540 = vmatprep.subr.mxu0 0.0
      %541 = vmatpush1.msra.mxu0 0.0
      %542 = vmatprep.subr.mxu0 0.0
      %543 = vmatpush1.msra.mxu0 0.0
      %544 = vmatprep.subr.mxu0 0.0
      %545 = vmatpush1.msra.mxu0 0.0
      %546 = vmatprep.subr.mxu0 0.0
      %547 = vmatpush1.msra.mxu0 0.0
      %548 = vmatprep.subr.mxu0 0.0
      %549 = vmatpush1.msra.mxu0 0.0
      %550 = vmatprep.subr.mxu0 0.0
      %551 = vmatpush1.msra.mxu0 0.0
      %552 = vmatprep.subr.mxu0 0.0
      %553 = vmatpush1.msra.mxu0 0.0
      %554 = vmatprep.subr.mxu0 0.0
      %555 = vmatpush1.msra.mxu0 0.0
      %556 = vmatprep.subr.mxu0 0.0
      %557 = vmatpush1.msra.mxu0 0.0
      %558 = vmatprep.subr.mxu0 0.0
      %559 = vmatpush1.msra.mxu0 0.0
      %560 = vmatprep.subr.mxu0 0.0
      %561 = vmatpush1.msra.mxu0 0.0
      %562 = vmatprep.subr.mxu0 0.0
      %563 = vmatpush1.msra.mxu0 0.0
      %564 = vmatprep.subr.mxu0 0.0
      %565 = vmatpush1.msra.mxu0 0.0
      %566 = vmatprep.subr.mxu0 0.0
      %567 = vmatpush1.msra.mxu0 0.0
      %568 = vmatprep.subr.mxu0 0.0
      %569 = vmatpush1.msra.mxu0 0.0
      %570 = vmatprep.subr.mxu0 0.0
      %571 = vmatpush1.msra.mxu0 0.0
      %572 = vmatprep.mubr.f32.mxu0 0.0
      %v573 = vand.u32 %v501, 4294901760
      %v574 = vsub.f32 %v501, %v573
      %v575 = vand.u32 %v574, 4294901760
      %v576 = vsub.f32 %v574, %v575
      %v577 = vand.u32 %v576, 4294901760
      %578 = vmatmul.mubr.f32.gmra.mrb[0].mxu0 %v577
      %v579 = vpop.f32.mrb[0].mxu0
      %v580 = vadd.f32 0.0, %v579
      %v581 = vpop.f32.mrb[0].mxu0
      %582 = vdwg.mxu0
      %583 = vmatprep.subr.mxu0 0.0
      %v584 = vand.u32 %v505, 4294901760
      %v585 = vsub.f32 %v505, %v584
      %v586 = vand.u32 %v585, 4294901760
      %v587 = vsub.f32 %v585, %v586
      %v588 = vand.u32 %v587, 4294901760
      %589 = vmatpush1.msra.mxu0 %v588
      %590 = vmatprep.subr.mxu0 0.0
      %591 = vmatpush1.msra.mxu0 0.0
      %592 = vmatprep.subr.mxu0 0.0
      %593 = vmatpush1.msra.mxu0 0.0
      %594 = vmatprep.subr.mxu0 0.0
      %595 = vmatpush1.msra.mxu0 0.0
      %596 = vmatprep.subr.mxu0 0.0
      %597 = vmatpush1.msra.mxu0 0.0
      %598 = vmatprep.subr.mxu0 0.0
      %599 = vmatpush1.msra.mxu0 0.0
      %600 = vmatprep.subr.mxu0 0.0
      %601 = vmatpush1.msra.mxu0 0.0
      %602 = vmatprep.subr.mxu0 0.0
      %603 = vmatpush1.msra.mxu0 0.0
      %604 = vmatprep.subr.mxu0 0.0
      %605 = vmatpush1.msra.mxu0 0.0
      %606 = vmatprep.subr.mxu0 0.0
      %607 = vmatpush1.msra.mxu0 0.0
      %608 = vmatprep.subr.mxu0 0.0
      %609 = vmatpush1.msra.mxu0 0.0
      %610 = vmatprep.subr.mxu0 0.0
      %611 = vmatpush1.msra.mxu0 0.0
      %612 = vmatprep.subr.mxu0 0.0
      %613 = vmatpush1.msra.mxu0 0.0
      %614 = vmatprep.subr.mxu0 0.0
      %615 = vmatpush1.msra.mxu0 0.0
      %616 = vmatprep.subr.mxu0 0.0
      %617 = vmatpush1.msra.mxu0 0.0
      %618 = vmatprep.subr.mxu0 0.0
      %619 = vmatpush1.msra.mxu0 0.0
      %620 = vmatprep.subr.mxu0 0.0
      %621 = vmatpush1.msra.mxu0 0.0
      %622 = vmatprep.subr.mxu0 0.0
      %623 = vmatpush1.msra.mxu0 0.0
      %624 = vmatprep.subr.mxu0 0.0
      %625 = vmatpush1.msra.mxu0 0.0
      %626 = vmatprep.subr.mxu0 0.0
      %627 = vmatpush1.msra.mxu0 0.0
      %628 = vmatprep.subr.mxu0 0.0
      %629 = vmatpush1.msra.mxu0 0.0
      %630 = vmatprep.subr.mxu0 0.0
      %631 = vmatpush1.msra.mxu0 0.0
      %632 = vmatprep.subr.mxu0 0.0
      %633 = vmatpush1.msra.mxu0 0.0
      %634 = vmatprep.subr.mxu0 0.0
      %635 = vmatpush1.msra.mxu0 0.0
      %636 = vmatprep.subr.mxu0 0.0
      %637 = vmatpush1.msra.mxu0 0.0
      %638 = vmatprep.subr.mxu0 0.0
      %639 = vmatpush1.msra.mxu0 0.0
      %640 = vmatprep.subr.mxu0 0.0
      %641 = vmatpush1.msra.mxu0 0.0
      %642 = vmatprep.subr.mxu0 0.0
      %643 = vmatpush1.msra.mxu0 0.0
      %644 = vmatprep.subr.mxu0 0.0
      %645 = vmatpush1.msra.mxu0 0.0
      %646 = vmatprep.subr.mxu0 0.0
      %647 = vmatpush1.msra.mxu0 0.0
      %648 = vmatprep.subr.mxu0 0.0
      %649 = vmatpush1.msra.mxu0 0.0
      %650 = vmatprep.subr.mxu0 0.0
      %651 = vmatpush1.msra.mxu0 0.0
      %652 = vmatprep.mubr.f32.mxu0 0.0
      %v653 = vand.u32 %v501, 4294901760
      %654 = vmatmul.mubr.f32.gmra.mrb[0].mxu0 %v653
      %v655 = vpop.f32.mrb[0].mxu0
      %v656 = vadd.f32 %v580, %v655
      %v657 = vpop.f32.mrb[0].mxu0
      %658 = vdwg.mxu0
      %659 = vmatprep.subr.mxu0 0.0
      %v660 = vand.u32 %v505, 4294901760
      %v661 = vsub.f32 %v505, %v660
      %662 = vmatpush1.msra.mxu0 %v661
      %663 = vmatprep.subr.mxu0 0.0
      %664 = vmatpush1.msra.mxu0 0.0
      %665 = vmatprep.subr.mxu0 0.0
      %666 = vmatpush1.msra.mxu0 0.0
      %667 = vmatprep.subr.mxu0 0.0
      %668 = vmatpush1.msra.mxu0 0.0
      %669 = vmatprep.subr.mxu0 0.0
      %670 = vmatpush1.msra.mxu0 0.0
      %671 = vmatprep.subr.mxu0 0.0
      %672 = vmatpush1.msra.mxu0 0.0
      %673 = vmatprep.subr.mxu0 0.0
      %674 = vmatpush1.msra.mxu0 0.0
      %675 = vmatprep.subr.mxu0 0.0
      %676 = vmatpush1.msra.mxu0 0.0
      %677 = vmatprep.subr.mxu0 0.0
      %678 = vmatpush1.msra.mxu0 0.0
      %679 = vmatprep.subr.mxu0 0.0
      %680 = vmatpush1.msra.mxu0 0.0
      %681 = vmatprep.subr.mxu0 0.0
      %682 = vmatpush1.msra.mxu0 0.0
      %683 = vmatprep.subr.mxu0 0.0
      %684 = vmatpush1.msra.mxu0 0.0
      %685 = vmatprep.subr.mxu0 0.0
      %686 = vmatpush1.msra.mxu0 0.0
      %687 = vmatprep.subr.mxu0 0.0
      %688 = vmatpush1.msra.mxu0 0.0
      %689 = vmatprep.subr.mxu0 0.0
      %690 = vmatpush1.msra.mxu0 0.0
      %691 = vmatprep.subr.mxu0 0.0
      %692 = vmatpush1.msra.mxu0 0.0
      %693 = vmatprep.subr.mxu0 0.0
      %694 = vmatpush1.msra.mxu0 0.0
      %695 = vmatprep.subr.mxu0 0.0
      %696 = vmatpush1.msra.mxu0 0.0
      %697 = vmatprep.subr.mxu0 0.0
      %698 = vmatpush1.msra.mxu0 0.0
      %699 = vmatprep.subr.mxu0 0.0
      %700 = vmatpush1.msra.mxu0 0.0
      %701 = vmatprep.subr.mxu0 0.0
      %702 = vmatpush1.msra.mxu0 0.0
      %703 = vmatprep.subr.mxu0 0.0
      %704 = vmatpush1.msra.mxu0 0.0
      %705 = vmatprep.subr.mxu0 0.0
      %706 = vmatpush1.msra.mxu0 0.0
      %707 = vmatprep.subr.mxu0 0.0
      %708 = vmatpush1.msra.mxu0 0.0
      %709 = vmatprep.subr.mxu0 0.0
      %710 = vmatpush1.msra.mxu0 0.0
      %711 = vmatprep.subr.mxu0 0.0
      %712 = vmatpush1.msra.mxu0 0.0
      %713 = vmatprep.subr.mxu0 0.0
      %714 = vmatpush1.msra.mxu0 0.0
      %715 = vmatprep.subr.mxu0 0.0
      %716 = vmatpush1.msra.mxu0 0.0
      %717 = vmatprep.subr.mxu0 0.0
      %718 = vmatpush1.msra.mxu0 0.0
      %719 = vmatprep.subr.mxu0 0.0
      %720 = vmatpush1.msra.mxu0 0.0
      %721 = vmatprep.subr.mxu0 0.0
      %722 = vmatpush1.msra.mxu0 0.0
      %723 = vmatprep.subr.mxu0 0.0
      %724 = vmatpush1.msra.mxu0 0.0
      %725 = vmatprep.mubr.f32.mxu0 0.0
      %v726 = vand.u32 %v501, 4294901760
      %v727 = vsub.f32 %v501, %v726
      %728 = vmatmul.mubr.f32.gmra.mrb[0].mxu0 %v727
      %v729 = vpop.f32.mrb[0].mxu0
      %v730 = vadd.f32 %v656, %v729
      %v731 = vpop.f32.mrb[0].mxu0
      %732 = vdwg.mxu0
      %733 = vmatprep.subr.mxu0 0.0
      %v734 = vand.u32 %v505, 4294901760
      %735 = vmatpush1.msra.mxu0 %v734
      %736 = vmatprep.subr.mxu0 0.0
      %737 = vmatpush1.msra.mxu0 0.0
      %738 = vmatprep.subr.mxu0 0.0
      %739 = vmatpush1.msra.mxu0 0.0
      %740 = vmatprep.subr.mxu0 0.0
      %741 = vmatpush1.msra.mxu0 0.0
      %742 = vmatprep.subr.mxu0 0.0
      %743 = vmatpush1.msra.mxu0 0.0
      %744 = vmatprep.subr.mxu0 0.0
      %745 = vmatpush1.msra.mxu0 0.0
      %746 = vmatprep.subr.mxu0 0.0
      %747 = vmatpush1.msra.mxu0 0.0
      %748 = vmatprep.subr.mxu0 0.0
      %749 = vmatpush1.msra.mxu0 0.0
      %750 = vmatprep.subr.mxu0 0.0
      %751 = vmatpush1.msra.mxu0 0.0
      %752 = vmatprep.subr.mxu0 0.0
      %753 = vmatpush1.msra.mxu0 0.0
      %754 = vmatprep.subr.mxu0 0.0
      %755 = vmatpush1.msra.mxu0 0.0
      %756 = vmatprep.subr.mxu0 0.0
      %757 = vmatpush1.msra.mxu0 0.0
      %758 = vmatprep.subr.mxu0 0.0
      %759 = vmatpush1.msra.mxu0 0.0
      %760 = vmatprep.subr.mxu0 0.0
      %761 = vmatpush1.msra.mxu0 0.0
      %762 = vmatprep.subr.mxu0 0.0
      %763 = vmatpush1.msra.mxu0 0.0
      %764 = vmatprep.subr.mxu0 0.0
      %765 = vmatpush1.msra.mxu0 0.0
      %766 = vmatprep.subr.mxu0 0.0
      %767 = vmatpush1.msra.mxu0 0.0
      %768 = vmatprep.subr.mxu0 0.0
      %769 = vmatpush1.msra.mxu0 0.0
      %770 = vmatprep.subr.mxu0 0.0
      %771 = vmatpush1.msra.mxu0 0.0
      %772 = vmatprep.subr.mxu0 0.0
      %773 = vmatpush1.msra.mxu0 0.0
      %774 = vmatprep.subr.mxu0 0.0
      %775 = vmatpush1.msra.mxu0 0.0
      %776 = vmatprep.subr.mxu0 0.0
      %777 = vmatpush1.msra.mxu0 0.0
      %778 = vmatprep.subr.mxu0 0.0
      %779 = vmatpush1.msra.mxu0 0.0
      %780 = vmatprep.subr.mxu0 0.0
      %781 = vmatpush1.msra.mxu0 0.0
      %782 = vmatprep.subr.mxu0 0.0
      %783 = vmatpush1.msra.mxu0 0.0
      %784 = vmatprep.subr.mxu0 0.0
      %785 = vmatpush1.msra.mxu0 0.0
      %786 = vmatprep.subr.mxu0 0.0
      %787 = vmatpush1.msra.mxu0 0.0
      %788 = vmatprep.subr.mxu0 0.0
      %789 = vmatpush1.msra.mxu0 0.0
      %790 = vmatprep.subr.mxu0 0.0
      %791 = vmatpush1.msra.mxu0 0.0
      %792 = vmatprep.subr.mxu0 0.0
      %793 = vmatpush1.msra.mxu0 0.0
      %794 = vmatprep.subr.mxu0 0.0
      %795 = vmatpush1.msra.mxu0 0.0
      %796 = vmatprep.subr.mxu0 0.0
      %797 = vmatpush1.msra.mxu0 0.0
      %798 = vmatprep.mubr.f32.mxu0 0.0
      %v799 = vand.u32 %v501, 4294901760
      %v800 = vsub.f32 %v501, %v799
      %v801 = vand.u32 %v800, 4294901760
      %802 = vmatmul.mubr.f32.gmra.mrb[0].mxu0 %v801
      %v803 = vpop.f32.mrb[0].mxu0
      %v804 = vadd.f32 %v730, %v803
      %v805 = vpop.f32.mrb[0].mxu0
      %806 = vdwg.mxu0
      %807 = vmatprep.subr.mxu0 0.0
      %v808 = vand.u32 %v505, 4294901760
      %v809 = vsub.f32 %v505, %v808
      %v810 = vand.u32 %v809, 4294901760
      %811 = vmatpush1.msra.mxu0 %v810
      %812 = vmatprep.subr.mxu0 0.0
      %813 = vmatpush1.msra.mxu0 0.0
      %814 = vmatprep.subr.mxu0 0.0
      %815 = vmatpush1.msra.mxu0 0.0
      %816 = vmatprep.subr.mxu0 0.0
      %817 = vmatpush1.msra.mxu0 0.0
      %818 = vmatprep.subr.mxu0 0.0
      %819 = vmatpush1.msra.mxu0 0.0
      %820 = vmatprep.subr.mxu0 0.0
      %821 = vmatpush1.msra.mxu0 0.0
      %822 = vmatprep.subr.mxu0 0.0
      %823 = vmatpush1.msra.mxu0 0.0
      %824 = vmatprep.subr.mxu0 0.0
      %825 = vmatpush1.msra.mxu0 0.0
      %826 = vmatprep.subr.mxu0 0.0
      %827 = vmatpush1.msra.mxu0 0.0
      %828 = vmatprep.subr.mxu0 0.0
      %829 = vmatpush1.msra.mxu0 0.0
      %830 = vmatprep.subr.mxu0 0.0
      %831 = vmatpush1.msra.mxu0 0.0
      %832 = vmatprep.subr.mxu0 0.0
      %833 = vmatpush1.msra.mxu0 0.0
      %834 = vmatprep.subr.mxu0 0.0
      %835 = vmatpush1.msra.mxu0 0.0
      %836 = vmatprep.subr.mxu0 0.0
      %837 = vmatpush1.msra.mxu0 0.0
      %838 = vmatprep.subr.mxu0 0.0
      %839 = vmatpush1.msra.mxu0 0.0
      %840 = vmatprep.subr.mxu0 0.0
      %841 = vmatpush1.msra.mxu0 0.0
      %842 = vmatprep.subr.mxu0 0.0
      %843 = vmatpush1.msra.mxu0 0.0
      %844 = vmatprep.subr.mxu0 0.0
      %845 = vmatpush1.msra.mxu0 0.0
      %846 = vmatprep.subr.mxu0 0.0
      %847 = vmatpush1.msra.mxu0 0.0
      %848 = vmatprep.subr.mxu0 0.0
      %849 = vmatpush1.msra.mxu0 0.0
      %850 = vmatprep.subr.mxu0 0.0
      %851 = vmatpush1.msra.mxu0 0.0
      %852 = vmatprep.subr.mxu0 0.0
      %853 = vmatpush1.msra.mxu0 0.0
      %854 = vmatprep.subr.mxu0 0.0
      %855 = vmatpush1.msra.mxu0 0.0
      %856 = vmatprep.subr.mxu0 0.0
      %857 = vmatpush1.msra.mxu0 0.0
      %858 = vmatprep.subr.mxu0 0.0
      %859 = vmatpush1.msra.mxu0 0.0
      %860 = vmatprep.subr.mxu0 0.0
      %861 = vmatpush1.msra.mxu0 0.0
      %862 = vmatprep.subr.mxu0 0.0
      %863 = vmatpush1.msra.mxu0 0.0
      %864 = vmatprep.subr.mxu0 0.0
      %865 = vmatpush1.msra.mxu0 0.0
      %866 = vmatprep.subr.mxu0 0.0
      %867 = vmatpush1.msra.mxu0 0.0
      %868 = vmatprep.subr.mxu0 0.0
      %869 = vmatpush1.msra.mxu0 0.0
      %870 = vmatprep.subr.mxu0 0.0
      %871 = vmatpush1.msra.mxu0 0.0
      %872 = vmatprep.subr.mxu0 0.0
      %873 = vmatpush1.msra.mxu0 0.0
      %874 = vmatprep.mubr.f32.mxu0 0.0
      %v875 = vand.u32 %v501, 4294901760
      %876 = vmatmul.mubr.f32.gmra.mrb[0].mxu0 %v875
      %v877 = vpop.f32.mrb[0].mxu0
      %v878 = vadd.f32 %v804, %v877
      %v879 = vpop.f32.mrb[0].mxu0
      %880 = vdwg.mxu0
      %881 = vmatprep.subr.mxu0 0.0
      %v882 = vand.u32 %v505, 4294901760
      %883 = vmatpush1.msra.mxu0 %v882
      %884 = vmatprep.subr.mxu0 0.0
      %885 = vmatpush1.msra.mxu0 0.0
      %886 = vmatprep.subr.mxu0 0.0
      %887 = vmatpush1.msra.mxu0 0.0
      %888 = vmatprep.subr.mxu0 0.0
      %889 = vmatpush1.msra.mxu0 0.0
      %890 = vmatprep.subr.mxu0 0.0
      %891 = vmatpush1.msra.mxu0 0.0
      %892 = vmatprep.subr.mxu0 0.0
      %893 = vmatpush1.msra.mxu0 0.0
      %894 = vmatprep.subr.mxu0 0.0
      %895 = vmatpush1.msra.mxu0 0.0
      %896 = vmatprep.subr.mxu0 0.0
      %897 = vmatpush1.msra.mxu0 0.0
      %898 = vmatprep.subr.mxu0 0.0
      %899 = vmatpush1.msra.mxu0 0.0
      %900 = vmatprep.subr.mxu0 0.0
      %901 = vmatpush1.msra.mxu0 0.0
      %902 = vmatprep.subr.mxu0 0.0
      %903 = vmatpush1.msra.mxu0 0.0
      %904 = vmatprep.subr.mxu0 0.0
      %905 = vmatpush1.msra.mxu0 0.0
      %906 = vmatprep.subr.mxu0 0.0
      %907 = vmatpush1.msra.mxu0 0.0
      %908 = vmatprep.subr.mxu0 0.0
      %909 = vmatpush1.msra.mxu0 0.0
      %910 = vmatprep.subr.mxu0 0.0
      %911 = vmatpush1.msra.mxu0 0.0
      %912 = vmatprep.subr.mxu0 0.0
      %913 = vmatpush1.msra.mxu0 0.0
      %914 = vmatprep.subr.mxu0 0.0
      %915 = vmatpush1.msra.mxu0 0.0
      %916 = vmatprep.subr.mxu0 0.0
      %917 = vmatpush1.msra.mxu0 0.0
      %918 = vmatprep.subr.mxu0 0.0
      %919 = vmatpush1.msra.mxu0 0.0
      %920 = vmatprep.subr.mxu0 0.0
      %921 = vmatpush1.msra.mxu0 0.0
      %922 = vmatprep.subr.mxu0 0.0
      %923 = vmatpush1.msra.mxu0 0.0
      %924 = vmatprep.subr.mxu0 0.0
      %925 = vmatpush1.msra.mxu0 0.0
      %926 = vmatprep.subr.mxu0 0.0
      %927 = vmatpush1.msra.mxu0 0.0
      %928 = vmatprep.subr.mxu0 0.0
      %929 = vmatpush1.msra.mxu0 0.0
      %930 = vmatprep.subr.mxu0 0.0
      %931 = vmatpush1.msra.mxu0 0.0
      %932 = vmatprep.subr.mxu0 0.0
      %933 = vmatpush1.msra.mxu0 0.0
      %934 = vmatprep.subr.mxu0 0.0
      %935 = vmatpush1.msra.mxu0 0.0
      %936 = vmatprep.subr.mxu0 0.0
      %937 = vmatpush1.msra.mxu0 0.0
      %938 = vmatprep.subr.mxu0 0.0
      %939 = vmatpush1.msra.mxu0 0.0
      %940 = vmatprep.subr.mxu0 0.0
      %941 = vmatpush1.msra.mxu0 0.0
      %942 = vmatprep.subr.mxu0 0.0
      %943 = vmatpush1.msra.mxu0 0.0
      %944 = vmatprep.subr.mxu0 0.0
      %945 = vmatpush1.msra.mxu0 0.0
      %946 = vmatprep.mubr.f32.mxu0 0.0
      %v947 = vand.u32 %v501, 4294901760
      %948 = vmatmul.mubr.f32.gmra.mrb[0].mxu0 %v947
      %v949 = vpop.f32.mrb[0].mxu0
      %v950 = vadd.f32 %v878, %v949
      %v951 = vpop.f32.mrb[0].mxu0
      %952 = vdwg.mxu0
      %v954 = vsel %vm499, %v496, 0
      %v957 = vsel %vm503, %v497, 0
      %959 = vmatprep.subr.mxu0 0.0
      %v960 = vand.u32 %v957, 4294901760
      %961 = vmatpush1.msra.mxu0 %v960
      %962 = vmatprep.subr.mxu0 0.0
      %963 = vmatpush1.msra.mxu0 0.0
      %964 = vmatprep.subr.mxu0 0.0
      %965 = vmatpush1.msra.mxu0 0.0
      %966 = vmatprep.subr.mxu0 0.0
      %967 = vmatpush1.msra.mxu0 0.0
      %968 = vmatprep.subr.mxu0 0.0
      %969 = vmatpush1.msra.mxu0 0.0
      %970 = vmatprep.subr.mxu0 0.0
      %971 = vmatpush1.msra.mxu0 0.0
      %972 = vmatprep.subr.mxu0 0.0
      %973 = vmatpush1.msra.mxu0 0.0
      %974 = vmatprep.subr.mxu0 0.0
      %975 = vmatpush1.msra.mxu0 0.0
      %976 = vmatprep.subr.mxu0 0.0
      %977 = vmatpush1.msra.mxu0 0.0
      %978 = vmatprep.subr.mxu0 0.0
      %979 = vmatpush1.msra.mxu0 0.0
      %980 = vmatprep.subr.mxu0 0.0
      %981 = vmatpush1.msra.mxu0 0.0
      %982 = vmatprep.subr.mxu0 0.0
      %983 = vmatpush1.msra.mxu0 0.0
      %984 = vmatprep.subr.mxu0 0.0
      %985 = vmatpush1.msra.mxu0 0.0
      %986 = vmatprep.subr.mxu0 0.0
      %987 = vmatpush1.msra.mxu0 0.0
      %988 = vmatprep.subr.mxu0 0.0
      %989 = vmatpush1.msra.mxu0 0.0
      %990 = vmatprep.subr.mxu0 0.0
      %991 = vmatpush1.msra.mxu0 0.0
      %992 = vmatprep.subr.mxu0 0.0
      %993 = vmatpush1.msra.mxu0 0.0
      %994 = vmatprep.subr.mxu0 0.0
      %995 = vmatpush1.msra.mxu0 0.0
      %996 = vmatprep.subr.mxu0 0.0
      %997 = vmatpush1.msra.mxu0 0.0
      %998 = vmatprep.subr.mxu0 0.0
      %999 = vmatpush1.msra.mxu0 0.0
      %1000 = vmatprep.subr.mxu0 0.0
      %1001 = vmatpush1.msra.mxu0 0.0
      %1002 = vmatprep.subr.mxu0 0.0
      %1003 = vmatpush1.msra.mxu0 0.0
      %1004 = vmatprep.subr.mxu0 0.0
      %1005 = vmatpush1.msra.mxu0 0.0
      %1006 = vmatprep.subr.mxu0 0.0
      %1007 = vmatpush1.msra.mxu0 0.0
      %1008 = vmatprep.subr.mxu0 0.0
      %1009 = vmatpush1.msra.mxu0 0.0
      %1010 = vmatprep.subr.mxu0 0.0
      %1011 = vmatpush1.msra.mxu0 0.0
      %1012 = vmatprep.subr.mxu0 0.0
      %1013 = vmatpush1.msra.mxu0 0.0
      %1014 = vmatprep.subr.mxu0 0.0
      %1015 = vmatpush1.msra.mxu0 0.0
      %1016 = vmatprep.subr.mxu0 0.0
      %1017 = vmatpush1.msra.mxu0 0.0
      %1018 = vmatprep.subr.mxu0 0.0
      %1019 = vmatpush1.msra.mxu0 0.0
      %1020 = vmatprep.subr.mxu0 0.0
      %1021 = vmatpush1.msra.mxu0 0.0
      %1022 = vmatprep.subr.mxu0 0.0
      %1023 = vmatpush1.msra.mxu0 0.0
      %1024 = vmatprep.mubr.f32.mxu0 0.0
      %v1025 = vand.u32 %v954, 4294901760
      %v1026 = vsub.f32 %v954, %v1025
      %v1027 = vand.u32 %v1026, 4294901760
      %v1028 = vsub.f32 %v1026, %v1027
      %v1029 = vand.u32 %v1028, 4294901760
      %1030 = vmatmul.mubr.f32.gmra.mrb[0].mxu0 %v1029
      %v1031 = vpop.f32.mrb[0].mxu0
      %v1032 = vadd.f32 %v950, %v1031
      %v1033 = vpop.f32.mrb[0].mxu0
      %1034 = vdwg.mxu0
      %1035 = vmatprep.subr.mxu0 0.0
      %v1036 = vand.u32 %v957, 4294901760
      %v1037 = vsub.f32 %v957, %v1036
      %v1038 = vand.u32 %v1037, 4294901760
      %v1039 = vsub.f32 %v1037, %v1038
      %v1040 = vand.u32 %v1039, 4294901760
      %1041 = vmatpush1.msra.mxu0 %v1040
      %1042 = vmatprep.subr.mxu0 0.0
      %1043 = vmatpush1.msra.mxu0 0.0
      %1044 = vmatprep.subr.mxu0 0.0
      %1045 = vmatpush1.msra.mxu0 0.0
      %1046 = vmatprep.subr.mxu0 0.0
      %1047 = vmatpush1.msra.mxu0 0.0
      %1048 = vmatprep.subr.mxu0 0.0
      %1049 = vmatpush1.msra.mxu0 0.0
      %1050 = vmatprep.subr.mxu0 0.0
      %1051 = vmatpush1.msra.mxu0 0.0
      %1052 = vmatprep.subr.mxu0 0.0
      %1053 = vmatpush1.msra.mxu0 0.0
      %1054 = vmatprep.subr.mxu0 0.0
      %1055 = vmatpush1.msra.mxu0 0.0
      %1056 = vmatprep.subr.mxu0 0.0
      %1057 = vmatpush1.msra.mxu0 0.0
      %1058 = vmatprep.subr.mxu0 0.0
      %1059 = vmatpush1.msra.mxu0 0.0
      %1060 = vmatprep.subr.mxu0 0.0
      %1061 = vmatpush1.msra.mxu0 0.0
      %1062 = vmatprep.subr.mxu0 0.0
      %1063 = vmatpush1.msra.mxu0 0.0
      %1064 = vmatprep.subr.mxu0 0.0
      %1065 = vmatpush1.msra.mxu0 0.0
      %1066 = vmatprep.subr.mxu0 0.0
      %1067 = vmatpush1.msra.mxu0 0.0
      %1068 = vmatprep.subr.mxu0 0.0
      %1069 = vmatpush1.msra.mxu0 0.0
      %1070 = vmatprep.subr.mxu0 0.0
      %1071 = vmatpush1.msra.mxu0 0.0
      %1072 = vmatprep.subr.mxu0 0.0
      %1073 = vmatpush1.msra.mxu0 0.0
      %1074 = vmatprep.subr.mxu0 0.0
      %1075 = vmatpush1.msra.mxu0 0.0
      %1076 = vmatprep.subr.mxu0 0.0
      %1077 = vmatpush1.msra.mxu0 0.0
      %1078 = vmatprep.subr.mxu0 0.0
      %1079 = vmatpush1.msra.mxu0 0.0
      %1080 = vmatprep.subr.mxu0 0.0
      %1081 = vmatpush1.msra.mxu0 0.0
      %1082 = vmatprep.subr.mxu0 0.0
      %1083 = vmatpush1.msra.mxu0 0.0
      %1084 = vmatprep.subr.mxu0 0.0
      %1085 = vmatpush1.msra.mxu0 0.0
      %1086 = vmatprep.subr.mxu0 0.0
      %1087 = vmatpush1.msra.mxu0 0.0
      %1088 = vmatprep.subr.mxu0 0.0
      %1089 = vmatpush1.msra.mxu0 0.0
      %1090 = vmatprep.subr.mxu0 0.0
      %1091 = vmatpush1.msra.mxu0 0.0
      %1092 = vmatprep.subr.mxu0 0.0
      %1093 = vmatpush1.msra.mxu0 0.0
      %1094 = vmatprep.subr.mxu0 0.0
      %1095 = vmatpush1.msra.mxu0 0.0
      %1096 = vmatprep.subr.mxu0 0.0
      %1097 = vmatpush1.msra.mxu0 0.0
      %1098 = vmatprep.subr.mxu0 0.0
      %1099 = vmatpush1.msra.mxu0 0.0
      %1100 = vmatprep.subr.mxu0 0.0
      %1101 = vmatpush1.msra.mxu0 0.0
      %1102 = vmatprep.subr.mxu0 0.0
      %1103 = vmatpush1.msra.mxu0 0.0
      %1104 = vmatprep.mubr.f32.mxu0 0.0
      %v1105 = vand.u32 %v954, 4294901760
      %1106 = vmatmul.mubr.f32.gmra.mrb[0].mxu0 %v1105
      %v1107 = vpop.f32.mrb[0].mxu0
      %v1108 = vadd.f32 %v1032, %v1107
      %v1109 = vpop.f32.mrb[0].mxu0
      %1110 = vdwg.mxu0
      %1111 = vmatprep.subr.mxu0 0.0
      %v1112 = vand.u32 %v957, 4294901760
      %v1113 = vsub.f32 %v957, %v1112
      %1114 = vmatpush1.msra.mxu0 %v1113
      %1115 = vmatprep.subr.mxu0 0.0
      %1116 = vmatpush1.msra.mxu0 0.0
      %1117 = vmatprep.subr.mxu0 0.0
      %1118 = vmatpush1.msra.mxu0 0.0
      %1119 = vmatprep.subr.mxu0 0.0
      %1120 = vmatpush1.msra.mxu0 0.0
      %1121 = vmatprep.subr.mxu0 0.0
      %1122 = vmatpush1.msra.mxu0 0.0
      %1123 = vmatprep.subr.mxu0 0.0
      %1124 = vmatpush1.msra.mxu0 0.0
      %1125 = vmatprep.subr.mxu0 0.0
      %1126 = vmatpush1.msra.mxu0 0.0
      %1127 = vmatprep.subr.mxu0 0.0
      %1128 = vmatpush1.msra.mxu0 0.0
      %1129 = vmatprep.subr.mxu0 0.0
      %1130 = vmatpush1.msra.mxu0 0.0
      %1131 = vmatprep.subr.mxu0 0.0
      %1132 = vmatpush1.msra.mxu0 0.0
      %1133 = vmatprep.subr.mxu0 0.0
      %1134 = vmatpush1.msra.mxu0 0.0
      %1135 = vmatprep.subr.mxu0 0.0
      %1136 = vmatpush1.msra.mxu0 0.0
      %1137 = vmatprep.subr.mxu0 0.0
      %1138 = vmatpush1.msra.mxu0 0.0
      %1139 = vmatprep.subr.mxu0 0.0
      %1140 = vmatpush1.msra.mxu0 0.0
      %1141 = vmatprep.subr.mxu0 0.0
      %1142 = vmatpush1.msra.mxu0 0.0
      %1143 = vmatprep.subr.mxu0 0.0
      %1144 = vmatpush1.msra.mxu0 0.0
      %1145 = vmatprep.subr.mxu0 0.0
      %1146 = vmatpush1.msra.mxu0 0.0
      %1147 = vmatprep.subr.mxu0 0.0
      %1148 = vmatpush1.msra.mxu0 0.0
      %1149 = vmatprep.subr.mxu0 0.0
      %1150 = vmatpush1.msra.mxu0 0.0
      %1151 = vmatprep.subr.mxu0 0.0
      %1152 = vmatpush1.msra.mxu0 0.0
      %1153 = vmatprep.subr.mxu0 0.0
      %1154 = vmatpush1.msra.mxu0 0.0
      %1155 = vmatprep.subr.mxu0 0.0
      %1156 = vmatpush1.msra.mxu0 0.0
      %1157 = vmatprep.subr.mxu0 0.0
      %1158 = vmatpush1.msra.mxu0 0.0
      %1159 = vmatprep.subr.mxu0 0.0
      %1160 = vmatpush1.msra.mxu0 0.0
      %1161 = vmatprep.subr.mxu0 0.0
      %1162 = vmatpush1.msra.mxu0 0.0
      %1163 = vmatprep.subr.mxu0 0.0
      %1164 = vmatpush1.msra.mxu0 0.0
      %1165 = vmatprep.subr.mxu0 0.0
      %1166 = vmatpush1.msra.mxu0 0.0
      %1167 = vmatprep.subr.mxu0 0.0
      %1168 = vmatpush1.msra.mxu0 0.0
      %1169 = vmatprep.subr.mxu0 0.0
      %1170 = vmatpush1.msra.mxu0 0.0
      %1171 = vmatprep.subr.mxu0 0.0
      %1172 = vmatpush1.msra.mxu0 0.0
      %1173 = vmatprep.subr.mxu0 0.0
      %1174 = vmatpush1.msra.mxu0 0.0
      %1175 = vmatprep.subr.mxu0 0.0
      %1176 = vmatpush1.msra.mxu0 0.0
      %1177 = vmatprep.mubr.f32.mxu0 0.0
      %v1178 = vand.u32 %v954, 4294901760
      %v1179 = vsub.f32 %v954, %v1178
      %1180 = vmatmul.mubr.f32.gmra.mrb[0].mxu0 %v1179
      %v1181 = vpop.f32.mrb[0].mxu0
      %v1182 = vadd.f32 %v1108, %v1181
      %v1183 = vpop.f32.mrb[0].mxu0
      %1184 = vdwg.mxu0
      %1185 = vmatprep.subr.mxu0 0.0
      %v1186 = vand.u32 %v957, 4294901760
      %1187 = vmatpush1.msra.mxu0 %v1186
      %1188 = vmatprep.subr.mxu0 0.0
      %1189 = vmatpush1.msra.mxu0 0.0
      %1190 = vmatprep.subr.mxu0 0.0
      %1191 = vmatpush1.msra.mxu0 0.0
      %1192 = vmatprep.subr.mxu0 0.0
      %1193 = vmatpush1.msra.mxu0 0.0
      %1194 = vmatprep.subr.mxu0 0.0
      %1195 = vmatpush1.msra.mxu0 0.0
      %1196 = vmatprep.subr.mxu0 0.0
      %1197 = vmatpush1.msra.mxu0 0.0
      %1198 = vmatprep.subr.mxu0 0.0
      %1199 = vmatpush1.msra.mxu0 0.0
      %1200 = vmatprep.subr.mxu0 0.0
      %1201 = vmatpush1.msra.mxu0 0.0
      %1202 = vmatprep.subr.mxu0 0.0
      %1203 = vmatpush1.msra.mxu0 0.0
      %1204 = vmatprep.subr.mxu0 0.0
      %1205 = vmatpush1.msra.mxu0 0.0
      %1206 = vmatprep.subr.mxu0 0.0
      %1207 = vmatpush1.msra.mxu0 0.0
      %1208 = vmatprep.subr.mxu0 0.0
      %1209 = vmatpush1.msra.mxu0 0.0
      %1210 = vmatprep.subr.mxu0 0.0
      %1211 = vmatpush1.msra.mxu0 0.0
      %1212 = vmatprep.subr.mxu0 0.0
      %1213 = vmatpush1.msra.mxu0 0.0
      %1214 = vmatprep.subr.mxu0 0.0
      %1215 = vmatpush1.msra.mxu0 0.0
      %1216 = vmatprep.subr.mxu0 0.0
      %1217 = vmatpush1.msra.mxu0 0.0
      %1218 = vmatprep.subr.mxu0 0.0
      %1219 = vmatpush1.msra.mxu0 0.0
      %1220 = vmatprep.subr.mxu0 0.0
      %1221 = vmatpush1.msra.mxu0 0.0
      %1222 = vmatprep.subr.mxu0 0.0
      %1223 = vmatpush1.msra.mxu0 0.0
      %1224 = vmatprep.subr.mxu0 0.0
      %1225 = vmatpush1.msra.mxu0 0.0
      %1226 = vmatprep.subr.mxu0 0.0
      %1227 = vmatpush1.msra.mxu0 0.0
      %1228 = vmatprep.subr.mxu0 0.0
      %1229 = vmatpush1.msra.mxu0 0.0
      %1230 = vmatprep.subr.mxu0 0.0
      %1231 = vmatpush1.msra.mxu0 0.0
      %1232 = vmatprep.subr.mxu0 0.0
      %1233 = vmatpush1.msra.mxu0 0.0
      %1234 = vmatprep.subr.mxu0 0.0
      %1235 = vmatpush1.msra.mxu0 0.0
      %1236 = vmatprep.subr.mxu0 0.0
      %1237 = vmatpush1.msra.mxu0 0.0
      %1238 = vmatprep.subr.mxu0 0.0
      %1239 = vmatpush1.msra.mxu0 0.0
      %1240 = vmatprep.subr.mxu0 0.0
      %1241 = vmatpush1.msra.mxu0 0.0
      %1242 = vmatprep.subr.mxu0 0.0
      %1243 = vmatpush1.msra.mxu0 0.0
      %1244 = vmatprep.subr.mxu0 0.0
      %1245 = vmatpush1.msra.mxu0 0.0
      %1246 = vmatprep.subr.mxu0 0.0
      %1247 = vmatpush1.msra.mxu0 0.0
      %1248 = vmatprep.subr.mxu0 0.0
      %1249 = vmatpush1.msra.mxu0 0.0
      %1250 = vmatprep.mubr.f32.mxu0 0.0
      %v1251 = vand.u32 %v954, 4294901760
      %v1252 = vsub.f32 %v954, %v1251
      %v1253 = vand.u32 %v1252, 4294901760
      %1254 = vmatmul.mubr.f32.gmra.mrb[0].mxu0 %v1253
      %v1255 = vpop.f32.mrb[0].mxu0
      %v1256 = vadd.f32 %v1182, %v1255
      %v1257 = vpop.f32.mrb[0].mxu0
      %1258 = vdwg.mxu0
      %1259 = vmatprep.subr.mxu0 0.0
      %v1260 = vand.u32 %v957, 4294901760
      %v1261 = vsub.f32 %v957, %v1260
      %v1262 = vand.u32 %v1261, 4294901760
      %1263 = vmatpush1.msra.mxu0 %v1262
      %1264 = vmatprep.subr.mxu0 0.0
      %1265 = vmatpush1.msra.mxu0 0.0
      %1266 = vmatprep.subr.mxu0 0.0
      %1267 = vmatpush1.msra.mxu0 0.0
      %1268 = vmatprep.subr.mxu0 0.0
      %1269 = vmatpush1.msra.mxu0 0.0
      %1270 = vmatprep.subr.mxu0 0.0
      %1271 = vmatpush1.msra.mxu0 0.0
      %1272 = vmatprep.subr.mxu0 0.0
      %1273 = vmatpush1.msra.mxu0 0.0
      %1274 = vmatprep.subr.mxu0 0.0
      %1275 = vmatpush1.msra.mxu0 0.0
      %1276 = vmatprep.subr.mxu0 0.0
      %1277 = vmatpush1.msra.mxu0 0.0
      %1278 = vmatprep.subr.mxu0 0.0
      %1279 = vmatpush1.msra.mxu0 0.0
      %1280 = vmatprep.subr.mxu0 0.0
      %1281 = vmatpush1.msra.mxu0 0.0
      %1282 = vmatprep.subr.mxu0 0.0
      %1283 = vmatpush1.msra.mxu0 0.0
      %1284 = vmatprep.subr.mxu0 0.0
      %1285 = vmatpush1.msra.mxu0 0.0
      %1286 = vmatprep.subr.mxu0 0.0
      %1287 = vmatpush1.msra.mxu0 0.0
      %1288 = vmatprep.subr.mxu0 0.0
      %1289 = vmatpush1.msra.mxu0 0.0
      %1290 = vmatprep.subr.mxu0 0.0
      %1291 = vmatpush1.msra.mxu0 0.0
      %1292 = vmatprep.subr.mxu0 0.0
      %1293 = vmatpush1.msra.mxu0 0.0
      %1294 = vmatprep.subr.mxu0 0.0
      %1295 = vmatpush1.msra.mxu0 0.0
      %1296 = vmatprep.subr.mxu0 0.0
      %1297 = vmatpush1.msra.mxu0 0.0
      %1298 = vmatprep.subr.mxu0 0.0
      %1299 = vmatpush1.msra.mxu0 0.0
      %1300 = vmatprep.subr.mxu0 0.0
      %1301 = vmatpush1.msra.mxu0 0.0
      %1302 = vmatprep.subr.mxu0 0.0
      %1303 = vmatpush1.msra.mxu0 0.0
      %1304 = vmatprep.subr.mxu0 0.0
      %1305 = vmatpush1.msra.mxu0 0.0
      %1306 = vmatprep.subr.mxu0 0.0
      %1307 = vmatpush1.msra.mxu0 0.0
      %1308 = vmatprep.subr.mxu0 0.0
      %1309 = vmatpush1.msra.mxu0 0.0
      %1310 = vmatprep.subr.mxu0 0.0
      %1311 = vmatpush1.msra.mxu0 0.0
      %1312 = vmatprep.subr.mxu0 0.0
      %1313 = vmatpush1.msra.mxu0 0.0
      %1314 = vmatprep.subr.mxu0 0.0
      %1315 = vmatpush1.msra.mxu0 0.0
      %1316 = vmatprep.subr.mxu0 0.0
      %1317 = vmatpush1.msra.mxu0 0.0
      %1318 = vmatprep.subr.mxu0 0.0
      %1319 = vmatpush1.msra.mxu0 0.0
      %1320 = vmatprep.subr.mxu0 0.0
      %1321 = vmatpush1.msra.mxu0 0.0
      %1322 = vmatprep.subr.mxu0 0.0
      %1323 = vmatpush1.msra.mxu0 0.0
      %1324 = vmatprep.subr.mxu0 0.0
      %1325 = vmatpush1.msra.mxu0 0.0
      %1326 = vmatprep.mubr.f32.mxu0 0.0
      %v1327 = vand.u32 %v954, 4294901760
      %1328 = vmatmul.mubr.f32.gmra.mrb[0].mxu0 %v1327
      %v1329 = vpop.f32.mrb[0].mxu0
      %v1330 = vadd.f32 %v1256, %v1329
      %v1331 = vpop.f32.mrb[0].mxu0
      %1332 = vdwg.mxu0
      %1333 = vmatprep.subr.mxu0 0.0
      %v1334 = vand.u32 %v957, 4294901760
      %1335 = vmatpush1.msra.mxu0 %v1334
      %1336 = vmatprep.subr.mxu0 0.0
      %1337 = vmatpush1.msra.mxu0 0.0
      %1338 = vmatprep.subr.mxu0 0.0
      %1339 = vmatpush1.msra.mxu0 0.0
      %1340 = vmatprep.subr.mxu0 0.0
      %1341 = vmatpush1.msra.mxu0 0.0
      %1342 = vmatprep.subr.mxu0 0.0
      %1343 = vmatpush1.msra.mxu0 0.0
      %1344 = vmatprep.subr.mxu0 0.0
      %1345 = vmatpush1.msra.mxu0 0.0
      %1346 = vmatprep.subr.mxu0 0.0
      %1347 = vmatpush1.msra.mxu0 0.0
      %1348 = vmatprep.subr.mxu0 0.0
      %1349 = vmatpush1.msra.mxu0 0.0
      %1350 = vmatprep.subr.mxu0 0.0
      %1351 = vmatpush1.msra.mxu0 0.0
      %1352 = vmatprep.subr.mxu0 0.0
      %1353 = vmatpush1.msra.mxu0 0.0
      %1354 = vmatprep.subr.mxu0 0.0
      %1355 = vmatpush1.msra.mxu0 0.0
      %1356 = vmatprep.subr.mxu0 0.0
      %1357 = vmatpush1.msra.mxu0 0.0
      %1358 = vmatprep.subr.mxu0 0.0
      %1359 = vmatpush1.msra.mxu0 0.0
      %1360 = vmatprep.subr.mxu0 0.0
      %1361 = vmatpush1.msra.mxu0 0.0
      %1362 = vmatprep.subr.mxu0 0.0
      %1363 = vmatpush1.msra.mxu0 0.0
      %1364 = vmatprep.subr.mxu0 0.0
      %1365 = vmatpush1.msra.mxu0 0.0
      %1366 = vmatprep.subr.mxu0 0.0
      %1367 = vmatpush1.msra.mxu0 0.0
      %1368 = vmatprep.subr.mxu0 0.0
      %1369 = vmatpush1.msra.mxu0 0.0
      %1370 = vmatprep.subr.mxu0 0.0
      %1371 = vmatpush1.msra.mxu0 0.0
      %1372 = vmatprep.subr.mxu0 0.0
      %1373 = vmatpush1.msra.mxu0 0.0
      %1374 = vmatprep.subr.mxu0 0.0
      %1375 = vmatpush1.msra.mxu0 0.0
      %1376 = vmatprep.subr.mxu0 0.0
      %1377 = vmatpush1.msra.mxu0 0.0
      %1378 = vmatprep.subr.mxu0 0.0
      %1379 = vmatpush1.msra.mxu0 0.0
      %1380 = vmatprep.subr.mxu0 0.0
      %1381 = vmatpush1.msra.mxu0 0.0
      %1382 = vmatprep.subr.mxu0 0.0
      %1383 = vmatpush1.msra.mxu0 0.0
      %1384 = vmatprep.subr.mxu0 0.0
      %1385 = vmatpush1.msra.mxu0 0.0
      %1386 = vmatprep.subr.mxu0 0.0
      %1387 = vmatpush1.msra.mxu0 0.0
      %1388 = vmatprep.subr.mxu0 0.0
      %1389 = vmatpush1.msra.mxu0 0.0
      %1390 = vmatprep.subr.mxu0 0.0
      %1391 = vmatpush1.msra.mxu0 0.0
      %1392 = vmatprep.subr.mxu0 0.0
      %1393 = vmatpush1.msra.mxu0 0.0
      %1394 = vmatprep.subr.mxu0 0.0
      %1395 = vmatpush1.msra.mxu0 0.0
      %1396 = vmatprep.subr.mxu0 0.0
      %1397 = vmatpush1.msra.mxu0 0.0
      %1398 = vmatprep.mubr.f32.mxu0 0.0
      %v1399 = vand.u32 %v954, 4294901760
      %1400 = vmatmul.mubr.f32.gmra.mrb[0].mxu0 %v1399
      %v1401 = vpop.f32.mrb[0].mxu0
      %v1402 = vadd.f32 %v1330, %v1401
      %v1403 = vpop.f32.mrb[0].mxu0
      %1404 = vdwg.mxu0
      %v1405 = vrot.slane %v491, 1
      %v1406 = vrot.slane %v492, 1
      %vm1407 = vcmp.lt.s32.totalorder %v468, 7
      %v1408 = vsel %vm1407, %v1405, %v1406
      %v1409 = vld [vmem:[%s447 + $0x8] sm:$0xf]
      %v1411 = vsel %vm499, %v1408, 0
      %v1414 = vsel %vm503, %v1409, 0
      %1416 = vmatprep.subr.mxu0 0.0
      %v1417 = vand.u32 %v1414, 4294901760
      %1418 = vmatpush1.msra.mxu0 %v1417
      %1419 = vmatprep.subr.mxu0 0.0
      %1420 = vmatpush1.msra.mxu0 0.0
      %1421 = vmatprep.subr.mxu0 0.0
      %1422 = vmatpush1.msra.mxu0 0.0
      %1423 = vmatprep.subr.mxu0 0.0
      %1424 = vmatpush1.msra.mxu0 0.0
      %1425 = vmatprep.subr.mxu0 0.0
      %1426 = vmatpush1.msra.mxu0 0.0
      %1427 = vmatprep.subr.mxu0 0.0
      %1428 = vmatpush1.msra.mxu0 0.0
      %1429 = vmatprep.subr.mxu0 0.0
      %1430 = vmatpush1.msra.mxu0 0.0
      %1431 = vmatprep.subr.mxu0 0.0
      %1432 = vmatpush1.msra.mxu0 0.0
      %1433 = vmatprep.subr.mxu0 0.0
      %1434 = vmatpush1.msra.mxu0 0.0
      %1435 = vmatprep.subr.mxu0 0.0
      %1436 = vmatpush1.msra.mxu0 0.0
      %1437 = vmatprep.subr.mxu0 0.0
      %1438 = vmatpush1.msra.mxu0 0.0
      %1439 = vmatprep.subr.mxu0 0.0
      %1440 = vmatpush1.msra.mxu0 0.0
      %1441 = vmatprep.subr.mxu0 0.0
      %1442 = vmatpush1.msra.mxu0 0.0
      %1443 = vmatprep.subr.mxu0 0.0
      %1444 = vmatpush1.msra.mxu0 0.0
      %1445 = vmatprep.subr.mxu0 0.0
      %1446 = vmatpush1.msra.mxu0 0.0
      %1447 = vmatprep.subr.mxu0 0.0
      %1448 = vmatpush1.msra.mxu0 0.0
      %1449 = vmatprep.subr.mxu0 0.0
      %1450 = vmatpush1.msra.mxu0 0.0
      %1451 = vmatprep.subr.mxu0 0.0
      %1452 = vmatpush1.msra.mxu0 0.0
      %1453 = vmatprep.subr.mxu0 0.0
      %1454 = vmatpush1.msra.mxu0 0.0
      %1455 = vmatprep.subr.mxu0 0.0
      %1456 = vmatpush1.msra.mxu0 0.0
      %1457 = vmatprep.subr.mxu0 0.0
      %1458 = vmatpush1.msra.mxu0 0.0
      %1459 = vmatprep.subr.mxu0 0.0
      %1460 = vmatpush1.msra.mxu0 0.0
      %1461 = vmatprep.subr.mxu0 0.0
      %1462 = vmatpush1.msra.mxu0 0.0
      %1463 = vmatprep.subr.mxu0 0.0
      %1464 = vmatpush1.msra.mxu0 0.0
      %1465 = vmatprep.subr.mxu0 0.0
      %1466 = vmatpush1.msra.mxu0 0.0
      %1467 = vmatprep.subr.mxu0 0.0
      %1468 = vmatpush1.msra.mxu0 0.0
      %1469 = vmatprep.subr.mxu0 0.0
      %1470 = vmatpush1.msra.mxu0 0.0
      %1471 = vmatprep.subr.mxu0 0.0
      %1472 = vmatpush1.msra.mxu0 0.0
      %1473 = vmatprep.subr.mxu0 0.0
      %1474 = vmatpush1.msra.mxu0 0.0
      %1475 = vmatprep.subr.mxu0 0.0
      %1476 = vmatpush1.msra.mxu0 0.0
      %1477 = vmatprep.subr.mxu0 0.0
      %1478 = vmatpush1.msra.mxu0 0.0
      %1479 = vmatprep.subr.mxu0 0.0
      %1480 = vmatpush1.msra.mxu0 0.0
      %1481 = vmatprep.mubr.f32.mxu0 0.0
      %v1482 = vand.u32 %v1411, 4294901760
      %v1483 = vsub.f32 %v1411, %v1482
      %v1484 = vand.u32 %v1483, 4294901760
      %v1485 = vsub.f32 %v1483, %v1484
      %v1486 = vand.u32 %v1485, 4294901760
      %1487 = vmatmul.mubr.f32.gmra.mrb[0].mxu0 %v1486
      %v1488 = vpop.f32.mrb[0].mxu0
      %v1489 = vadd.f32 0.0, %v1488
      %v1490 = vpop.f32.mrb[0].mxu0
      %1491 = vdwg.mxu0
      %1492 = vmatprep.subr.mxu0 0.0
      %v1493 = vand.u32 %v1414, 4294901760
      %v1494 = vsub.f32 %v1414, %v1493
      %v1495 = vand.u32 %v1494, 4294901760
      %v1496 = vsub.f32 %v1494, %v1495
      %v1497 = vand.u32 %v1496, 4294901760
      %1498 = vmatpush1.msra.mxu0 %v1497
      %1499 = vmatprep.subr.mxu0 0.0
      %1500 = vmatpush1.msra.mxu0 0.0
      %1501 = vmatprep.subr.mxu0 0.0
      %1502 = vmatpush1.msra.mxu0 0.0
      %1503 = vmatprep.subr.mxu0 0.0
      %1504 = vmatpush1.msra.mxu0 0.0
      %1505 = vmatprep.subr.mxu0 0.0
      %1506 = vmatpush1.msra.mxu0 0.0
      %1507 = vmatprep.subr.mxu0 0.0
      %1508 = vmatpush1.msra.mxu0 0.0
      %1509 = vmatprep.subr.mxu0 0.0
      %1510 = vmatpush1.msra.mxu0 0.0
      %1511 = vmatprep.subr.mxu0 0.0
      %1512 = vmatpush1.msra.mxu0 0.0
      %1513 = vmatprep.subr.mxu0 0.0
      %1514 = vmatpush1.msra.mxu0 0.0
      %1515 = vmatprep.subr.mxu0 0.0
      %1516 = vmatpush1.msra.mxu0 0.0
      %1517 = vmatprep.subr.mxu0 0.0
      %1518 = vmatpush1.msra.mxu0 0.0
      %1519 = vmatprep.subr.mxu0 0.0
      %1520 = vmatpush1.msra.mxu0 0.0
      %1521 = vmatprep.subr.mxu0 0.0
      %1522 = vmatpush1.msra.mxu0 0.0
      %1523 = vmatprep.subr.mxu0 0.0
      %1524 = vmatpush1.msra.mxu0 0.0
      %1525 = vmatprep.subr.mxu0 0.0
      %1526 = vmatpush1.msra.mxu0 0.0
      %1527 = vmatprep.subr.mxu0 0.0
      %1528 = vmatpush1.msra.mxu0 0.0
      %1529 = vmatprep.subr.mxu0 0.0
      %1530 = vmatpush1.msra.mxu0 0.0
      %1531 = vmatprep.subr.mxu0 0.0
      %1532 = vmatpush1.msra.mxu0 0.0
      %1533 = vmatprep.subr.mxu0 0.0
      %1534 = vmatpush1.msra.mxu0 0.0
      %1535 = vmatprep.subr.mxu0 0.0
      %1536 = vmatpush1.msra.mxu0 0.0
      %1537 = vmatprep.subr.mxu0 0.0
      %1538 = vmatpush1.msra.mxu0 0.0
      %1539 = vmatprep.subr.mxu0 0.0
      %1540 = vmatpush1.msra.mxu0 0.0
      %1541 = vmatprep.subr.mxu0 0.0
      %1542 = vmatpush1.msra.mxu0 0.0
      %1543 = vmatprep.subr.mxu0 0.0
      %1544 = vmatpush1.msra.mxu0 0.0
      %1545 = vmatprep.subr.mxu0 0.0
      %1546 = vmatpush1.msra.mxu0 0.0
      %1547 = vmatprep.subr.mxu0 0.0
      %1548 = vmatpush1.msra.mxu0 0.0
      %1549 = vmatprep.subr.mxu0 0.0
      %1550 = vmatpush1.msra.mxu0 0.0
      %1551 = vmatprep.subr.mxu0 0.0
      %1552 = vmatpush1.msra.mxu0 0.0
      %1553 = vmatprep.subr.mxu0 0.0
      %1554 = vmatpush1.msra.mxu0 0.0
      %1555 = vmatprep.subr.mxu0 0.0
      %1556 = vmatpush1.msra.mxu0 0.0
      %1557 = vmatprep.subr.mxu0 0.0
      %1558 = vmatpush1.msra.mxu0 0.0
      %1559 = vmatprep.subr.mxu0 0.0
      %1560 = vmatpush1.msra.mxu0 0.0
      %1561 = vmatprep.mubr.f32.mxu0 0.0
      %v1562 = vand.u32 %v1411, 4294901760
      %1563 = vmatmul.mubr.f32.gmra.mrb[0].mxu0 %v1562
      %v1564 = vpop.f32.mrb[0].mxu0
      %v1565 = vadd.f32 %v1489, %v1564
      %v1566 = vpop.f32.mrb[0].mxu0
      %1567 = vdwg.mxu0
      %1568 = vmatprep.subr.mxu0 0.0
      %v1569 = vand.u32 %v1414, 4294901760
      %v1570 = vsub.f32 %v1414, %v1569
      %1571 = vmatpush1.msra.mxu0 %v1570
      %1572 = vmatprep.subr.mxu0 0.0
      %1573 = vmatpush1.msra.mxu0 0.0
      %1574 = vmatprep.subr.mxu0 0.0
      %1575 = vmatpush1.msra.mxu0 0.0
      %1576 = vmatprep.subr.mxu0 0.0
      %1577 = vmatpush1.msra.mxu0 0.0
      %1578 = vmatprep.subr.mxu0 0.0
      %1579 = vmatpush1.msra.mxu0 0.0
      %1580 = vmatprep.subr.mxu0 0.0
      %1581 = vmatpush1.msra.mxu0 0.0
      %1582 = vmatprep.subr.mxu0 0.0
      %1583 = vmatpush1.msra.mxu0 0.0
      %1584 = vmatprep.subr.mxu0 0.0
      %1585 = vmatpush1.msra.mxu0 0.0
      %1586 = vmatprep.subr.mxu0 0.0
      %1587 = vmatpush1.msra.mxu0 0.0
      %1588 = vmatprep.subr.mxu0 0.0
      %1589 = vmatpush1.msra.mxu0 0.0
      %1590 = vmatprep.subr.mxu0 0.0
      %1591 = vmatpush1.msra.mxu0 0.0
      %1592 = vmatprep.subr.mxu0 0.0
      %1593 = vmatpush1.msra.mxu0 0.0
      %1594 = vmatprep.subr.mxu0 0.0
      %1595 = vmatpush1.msra.mxu0 0.0
      %1596 = vmatprep.subr.mxu0 0.0
      %1597 = vmatpush1.msra.mxu0 0.0
      %1598 = vmatprep.subr.mxu0 0.0
      %1599 = vmatpush1.msra.mxu0 0.0
      %1600 = vmatprep.subr.mxu0 0.0
      %1601 = vmatpush1.msra.mxu0 0.0
      %1602 = vmatprep.subr.mxu0 0.0
      %1603 = vmatpush1.msra.mxu0 0.0
      %1604 = vmatprep.subr.mxu0 0.0
      %1605 = vmatpush1.msra.mxu0 0.0
      %1606 = vmatprep.subr.mxu0 0.0
      %1607 = vmatpush1.msra.mxu0 0.0
      %1608 = vmatprep.subr.mxu0 0.0
      %1609 = vmatpush1.msra.mxu0 0.0
      %1610 = vmatprep.subr.mxu0 0.0
      %1611 = vmatpush1.msra.mxu0 0.0
      %1612 = vmatprep.subr.mxu0 0.0
      %1613 = vmatpush1.msra.mxu0 0.0
      %1614 = vmatprep.subr.mxu0 0.0
      %1615 = vmatpush1.msra.mxu0 0.0
      %1616 = vmatprep.subr.mxu0 0.0
      %1617 = vmatpush1.msra.mxu0 0.0
      %1618 = vmatprep.subr.mxu0 0.0
      %1619 = vmatpush1.msra.mxu0 0.0
      %1620 = vmatprep.subr.mxu0 0.0
      %1621 = vmatpush1.msra.mxu0 0.0
      %1622 = vmatprep.subr.mxu0 0.0
      %1623 = vmatpush1.msra.mxu0 0.0
      %1624 = vmatprep.subr.mxu0 0.0
      %1625 = vmatpush1.msra.mxu0 0.0
      %1626 = vmatprep.subr.mxu0 0.0
      %1627 = vmatpush1.msra.mxu0 0.0
      %1628 = vmatprep.subr.mxu0 0.0
      %1629 = vmatpush1.msra.mxu0 0.0
      %1630 = vmatprep.subr.mxu0 0.0
      %1631 = vmatpush1.msra.mxu0 0.0
      %1632 = vmatprep.subr.mxu0 0.0
      %1633 = vmatpush1.msra.mxu0 0.0
      %1634 = vmatprep.mubr.f32.mxu0 0.0
      %v1635 = vand.u32 %v1411, 4294901760
      %v1636 = vsub.f32 %v1411, %v1635
      %1637 = vmatmul.mubr.f32.gmra.mrb[0].mxu0 %v1636
      %v1638 = vpop.f32.mrb[0].mxu0
      %v1639 = vadd.f32 %v1565, %v1638
      %v1640 = vpop.f32.mrb[0].mxu0
      %1641 = vdwg.mxu0
      %1642 = vmatprep.subr.mxu0 0.0
      %v1643 = vand.u32 %v1414, 4294901760
      %1644 = vmatpush1.msra.mxu0 %v1643
      %1645 = vmatprep.subr.mxu0 0.0
      %1646 = vmatpush1.msra.mxu0 0.0
      %1647 = vmatprep.subr.mxu0 0.0
      %1648 = vmatpush1.msra.mxu0 0.0
      %1649 = vmatprep.subr.mxu0 0.0
      %1650 = vmatpush1.msra.mxu0 0.0
      %1651 = vmatprep.subr.mxu0 0.0
      %1652 = vmatpush1.msra.mxu0 0.0
      %1653 = vmatprep.subr.mxu0 0.0
      %1654 = vmatpush1.msra.mxu0 0.0
      %1655 = vmatprep.subr.mxu0 0.0
      %1656 = vmatpush1.msra.mxu0 0.0
      %1657 = vmatprep.subr.mxu0 0.0
      %1658 = vmatpush1.msra.mxu0 0.0
      %1659 = vmatprep.subr.mxu0 0.0
      %1660 = vmatpush1.msra.mxu0 0.0
      %1661 = vmatprep.subr.mxu0 0.0
      %1662 = vmatpush1.msra.mxu0 0.0
      %1663 = vmatprep.subr.mxu0 0.0
      %1664 = vmatpush1.msra.mxu0 0.0
      %1665 = vmatprep.subr.mxu0 0.0
      %1666 = vmatpush1.msra.mxu0 0.0
      %1667 = vmatprep.subr.mxu0 0.0
      %1668 = vmatpush1.msra.mxu0 0.0
      %1669 = vmatprep.subr.mxu0 0.0
      %1670 = vmatpush1.msra.mxu0 0.0
      %1671 = vmatprep.subr.mxu0 0.0
      %1672 = vmatpush1.msra.mxu0 0.0
      %1673 = vmatprep.subr.mxu0 0.0
      %1674 = vmatpush1.msra.mxu0 0.0
      %1675 = vmatprep.subr.mxu0 0.0
      %1676 = vmatpush1.msra.mxu0 0.0
      %1677 = vmatprep.subr.mxu0 0.0
      %1678 = vmatpush1.msra.mxu0 0.0
      %1679 = vmatprep.subr.mxu0 0.0
      %1680 = vmatpush1.msra.mxu0 0.0
      %1681 = vmatprep.subr.mxu0 0.0
      %1682 = vmatpush1.msra.mxu0 0.0
      %1683 = vmatprep.subr.mxu0 0.0
      %1684 = vmatpush1.msra.mxu0 0.0
      %1685 = vmatprep.subr.mxu0 0.0
      %1686 = vmatpush1.msra.mxu0 0.0
      %1687 = vmatprep.subr.mxu0 0.0
      %1688 = vmatpush1.msra.mxu0 0.0
      %1689 = vmatprep.subr.mxu0 0.0
      %1690 = vmatpush1.msra.mxu0 0.0
      %1691 = vmatprep.subr.mxu0 0.0
      %1692 = vmatpush1.msra.mxu0 0.0
      %1693 = vmatprep.subr.mxu0 0.0
      %1694 = vmatpush1.msra.mxu0 0.0
      %1695 = vmatprep.subr.mxu0 0.0
      %1696 = vmatpush1.msra.mxu0 0.0
      %1697 = vmatprep.subr.mxu0 0.0
      %1698 = vmatpush1.msra.mxu0 0.0
      %1699 = vmatprep.subr.mxu0 0.0
      %1700 = vmatpush1.msra.mxu0 0.0
      %1701 = vmatprep.subr.mxu0 0.0
      %1702 = vmatpush1.msra.mxu0 0.0
      %1703 = vmatprep.subr.mxu0 0.0
      %1704 = vmatpush1.msra.mxu0 0.0
      %1705 = vmatprep.subr.mxu0 0.0
      %1706 = vmatpush1.msra.mxu0 0.0
      %1707 = vmatprep.mubr.f32.mxu0 0.0
      %v1708 = vand.u32 %v1411, 4294901760
      %v1709 = vsub.f32 %v1411, %v1708
      %v1710 = vand.u32 %v1709, 4294901760
      %1711 = vmatmul.mubr.f32.gmra.mrb[0].mxu0 %v1710
      %v1712 = vpop.f32.mrb[0].mxu0
      %v1713 = vadd.f32 %v1639, %v1712
      %v1714 = vpop.f32.mrb[0].mxu0
      %1715 = vdwg.mxu0
      %1716 = vmatprep.subr.mxu0 0.0
      %v1717 = vand.u32 %v1414, 4294901760
      %v1718 = vsub.f32 %v1414, %v1717
      %v1719 = vand.u32 %v1718, 4294901760
      %1720 = vmatpush1.msra.mxu0 %v1719
      %1721 = vmatprep.subr.mxu0 0.0
      %1722 = vmatpush1.msra.mxu0 0.0
      %1723 = vmatprep.subr.mxu0 0.0
      %1724 = vmatpush1.msra.mxu0 0.0
      %1725 = vmatprep.subr.mxu0 0.0
      %1726 = vmatpush1.msra.mxu0 0.0
      %1727 = vmatprep.subr.mxu0 0.0
      %1728 = vmatpush1.msra.mxu0 0.0
      %1729 = vmatprep.subr.mxu0 0.0
      %1730 = vmatpush1.msra.mxu0 0.0
      %1731 = vmatprep.subr.mxu0 0.0
      %1732 = vmatpush1.msra.mxu0 0.0
      %1733 = vmatprep.subr.mxu0 0.0
      %1734 = vmatpush1.msra.mxu0 0.0
      %1735 = vmatprep.subr.mxu0 0.0
      %1736 = vmatpush1.msra.mxu0 0.0
      %1737 = vmatprep.subr.mxu0 0.0
      %1738 = vmatpush1.msra.mxu0 0.0
      %1739 = vmatprep.subr.mxu0 0.0
      %1740 = vmatpush1.msra.mxu0 0.0
      %1741 = vmatprep.subr.mxu0 0.0
      %1742 = vmatpush1.msra.mxu0 0.0
      %1743 = vmatprep.subr.mxu0 0.0
      %1744 = vmatpush1.msra.mxu0 0.0
      %1745 = vmatprep.subr.mxu0 0.0
      %1746 = vmatpush1.msra.mxu0 0.0
      %1747 = vmatprep.subr.mxu0 0.0
      %1748 = vmatpush1.msra.mxu0 0.0
      %1749 = vmatprep.subr.mxu0 0.0
      %1750 = vmatpush1.msra.mxu0 0.0
      %1751 = vmatprep.subr.mxu0 0.0
      %1752 = vmatpush1.msra.mxu0 0.0
      %1753 = vmatprep.subr.mxu0 0.0
      %1754 = vmatpush1.msra.mxu0 0.0
      %1755 = vmatprep.subr.mxu0 0.0
      %1756 = vmatpush1.msra.mxu0 0.0
      %1757 = vmatprep.subr.mxu0 0.0
      %1758 = vmatpush1.msra.mxu0 0.0
      %1759 = vmatprep.subr.mxu0 0.0
      %1760 = vmatpush1.msra.mxu0 0.0
      %1761 = vmatprep.subr.mxu0 0.0
      %1762 = vmatpush1.msra.mxu0 0.0
      %1763 = vmatprep.subr.mxu0 0.0
      %1764 = vmatpush1.msra.mxu0 0.0
      %1765 = vmatprep.subr.mxu0 0.0
      %1766 = vmatpush1.msra.mxu0 0.0
      %1767 = vmatprep.subr.mxu0 0.0
      %1768 = vmatpush1.msra.mxu0 0.0
      %1769 = vmatprep.subr.mxu0 0.0
      %1770 = vmatpush1.msra.mxu0 0.0
      %1771 = vmatprep.subr.mxu0 0.0
      %1772 = vmatpush1.msra.mxu0 0.0
      %1773 = vmatprep.subr.mxu0 0.0
      %1774 = vmatpush1.msra.mxu0 0.0
      %1775 = vmatprep.subr.mxu0 0.0
      %1776 = vmatpush1.msra.mxu0 0.0
      %1777 = vmatprep.subr.mxu0 0.0
      %1778 = vmatpush1.msra.mxu0 0.0
      %1779 = vmatprep.subr.mxu0 0.0
      %1780 = vmatpush1.msra.mxu0 0.0
      %1781 = vmatprep.subr.mxu0 0.0
      %1782 = vmatpush1.msra.mxu0 0.0
      %1783 = vmatprep.mubr.f32.mxu0 0.0
      %v1784 = vand.u32 %v1411, 4294901760
      %1785 = vmatmul.mubr.f32.gmra.mrb[0].mxu0 %v1784
      %v1786 = vpop.f32.mrb[0].mxu0
      %v1787 = vadd.f32 %v1713, %v1786
      %v1788 = vpop.f32.mrb[0].mxu0
      %1789 = vdwg.mxu0
      %1790 = vmatprep.subr.mxu0 0.0
      %v1791 = vand.u32 %v1414, 4294901760
      %1792 = vmatpush1.msra.mxu0 %v1791
      %1793 = vmatprep.subr.mxu0 0.0
      %1794 = vmatpush1.msra.mxu0 0.0
      %1795 = vmatprep.subr.mxu0 0.0
      %1796 = vmatpush1.msra.mxu0 0.0
      %1797 = vmatprep.subr.mxu0 0.0
      %1798 = vmatpush1.msra.mxu0 0.0
      %1799 = vmatprep.subr.mxu0 0.0
      %1800 = vmatpush1.msra.mxu0 0.0
      %1801 = vmatprep.subr.mxu0 0.0
      %1802 = vmatpush1.msra.mxu0 0.0
      %1803 = vmatprep.subr.mxu0 0.0
      %1804 = vmatpush1.msra.mxu0 0.0
      %1805 = vmatprep.subr.mxu0 0.0
      %1806 = vmatpush1.msra.mxu0 0.0
      %1807 = vmatprep.subr.mxu0 0.0
      %1808 = vmatpush1.msra.mxu0 0.0
      %1809 = vmatprep.subr.mxu0 0.0
      %1810 = vmatpush1.msra.mxu0 0.0
      %1811 = vmatprep.subr.mxu0 0.0
      %1812 = vmatpush1.msra.mxu0 0.0
      %1813 = vmatprep.subr.mxu0 0.0
      %1814 = vmatpush1.msra.mxu0 0.0
      %1815 = vmatprep.subr.mxu0 0.0
      %1816 = vmatpush1.msra.mxu0 0.0
      %1817 = vmatprep.subr.mxu0 0.0
      %1818 = vmatpush1.msra.mxu0 0.0
      %1819 = vmatprep.subr.mxu0 0.0
      %1820 = vmatpush1.msra.mxu0 0.0
      %1821 = vmatprep.subr.mxu0 0.0
      %1822 = vmatpush1.msra.mxu0 0.0
      %1823 = vmatprep.subr.mxu0 0.0
      %1824 = vmatpush1.msra.mxu0 0.0
      %1825 = vmatprep.subr.mxu0 0.0
      %1826 = vmatpush1.msra.mxu0 0.0
      %1827 = vmatprep.subr.mxu0 0.0
      %1828 = vmatpush1.msra.mxu0 0.0
      %1829 = vmatprep.subr.mxu0 0.0
      %1830 = vmatpush1.msra.mxu0 0.0
      %1831 = vmatprep.subr.mxu0 0.0
      %1832 = vmatpush1.msra.mxu0 0.0
      %1833 = vmatprep.subr.mxu0 0.0
      %1834 = vmatpush1.msra.mxu0 0.0
      %1835 = vmatprep.subr.mxu0 0.0
      %1836 = vmatpush1.msra.mxu0 0.0
      %1837 = vmatprep.subr.mxu0 0.0
      %1838 = vmatpush1.msra.mxu0 0.0
      %1839 = vmatprep.subr.mxu0 0.0
      %1840 = vmatpush1.msra.mxu0 0.0
      %1841 = vmatprep.subr.mxu0 0.0
      %1842 = vmatpush1.msra.mxu0 0.0
      %1843 = vmatprep.subr.mxu0 0.0
      %1844 = vmatpush1.msra.mxu0 0.0
      %1845 = vmatprep.subr.mxu0 0.0
      %1846 = vmatpush1.msra.mxu0 0.0
      %1847 = vmatprep.subr.mxu0 0.0
      %1848 = vmatpush1.msra.mxu0 0.0
      %1849 = vmatprep.subr.mxu0 0.0
      %1850 = vmatpush1.msra.mxu0 0.0
      %1851 = vmatprep.subr.mxu0 0.0
      %1852 = vmatpush1.msra.mxu0 0.0
      %1853 = vmatprep.subr.mxu0 0.0
      %1854 = vmatpush1.msra.mxu0 0.0
      %1855 = vmatprep.mubr.f32.mxu0 0.0
      %v1856 = vand.u32 %v1411, 4294901760
      %1857 = vmatmul.mubr.f32.gmra.mrb[0].mxu0 %v1856
      %v1858 = vpop.f32.mrb[0].mxu0
      %v1859 = vadd.f32 %v1787, %v1858
      %v1860 = vpop.f32.mrb[0].mxu0
      %1861 = vdwg.mxu0
      %v1862 = vadd.f32 %v1402, %v1859
      %v1863 = vld [vmem:[%s450] sm:$0x1]
      %v1865 = vlaneseq
      %v1866 = vshrl.u32 %v1865, 7
      %v1867 = vsub.s32 0, %v1866
      %v1868 = vrot.slane %v1863, %v1867
      %v1870 = vadd.f32 %v1862, %v1868
      %vm1871 = vcmask 64512
      %1872 = vst.msk [vmem:[%s461] sm:$0xff] %vm1871, %v1870
      %p1873 = scmp.lt.s32.totalorder %s21, 1
      %s1874 = scalar_select %p1873, %s21, 1
      %p1875 = scmp.lt.s32.totalorder %s23, 1
      %s1876 = scalar_select %p1875, %s23, 1
      %p1877 = scmp.lt.s32.totalorder %s22, 0
      %s1878 = scalar_select %p1877, %s22, 0
      %s1879 = sadd.s32 %s1878, %s1876
      %s1880 = smul.addr %s1874, 2
      %s1881 = sadd.s32 %s1879, %s1880
      %s1882 = smul.addr %s1881, 8
      %s1883 = scalar_lea.vmem %s5, %s1882
      // Predicated region
      $region41: #{tpu_custom_call.1} parent=39 // pred_check
        %p1884 = pneg %p221
      $region42: #{tpu_custom_call.1} parent=39 // pred_check_branch
        %1886 = sbr.rel (%p1884) target = $region44
      $region43: #{tpu_custom_call.1} parent=39 // pred_region
        _
      $region44: #{tpu_custom_call.1} parent=39 // pred_fallthru
        _
    $region40: #{tpu_custom_call.1} parent=5 // pred_fallthru
      _
    %p1887 = scmp.le.s32.totalorder 2, %s11
    // Predicated region
    $region45: #{tpu_custom_call.1} parent=5 // pred_check
      %p1888 = pneg %p1887
    $region46: #{tpu_custom_call.1} parent=5 // pred_check_branch
      %1890 = sbr.rel (%p1888) target = $region48
    $region47: #{tpu_custom_call.1} parent=5 // pred_region
      %s1891 = ssub.s32 %s11, 2
      // Predicated region
      $region49: #{tpu_custom_call.1} parent=47 // pred_check
        %p1892 = pneg %p227
      $region50: #{tpu_custom_call.1} parent=47 // pred_check_branch
        %1894 = sbr.rel (%p1892) target = $region52
      $region51: #{tpu_custom_call.1} parent=47 // pred_region
        %p1895 = scmp.lt.s32.totalorder %s24, 1
        %s1896 = scalar_select %p1895, %s24, 1
        %p1897 = scmp.lt.s32.totalorder %s26, 1
        %s1898 = scalar_select %p1897, %s26, 1
        %p1899 = scmp.lt.s32.totalorder %s25, 0
        %s1900 = scalar_select %p1899, %s25, 0
        %s1901 = sadd.s32 %s1900, %s1898
        %s1902 = smul.addr %s1896, 2
        %s1903 = sadd.s32 %s1901, %s1902
        %s1904 = smul.addr %s1903, 8
        %s1905 = scalar_lea.vmem %s5, %s1904
      $region52: #{tpu_custom_call.1} parent=47 // pred_fallthru
        _
    $region48: #{tpu_custom_call.1} parent=5 // pred_fallthru
      _
  $region6: #{tpu_custom_call.1} parent=0 // loop_footer
    %s15 = sadd.s32 1, %s11
  $region7: #{tpu_custom_call.1} parent=0 // loop_footer_branch
    %10 = sbr.rel target = $region3
  $region8: #{tpu_custom_call.1} parent=0 // loop_exit
    _

</llo_original>
